<compile_context>
chip_gen: v7x
topology: tpu7x:2x2x1
jax: 0.10.0
libtpu: 0.0.40
codegen_flags: <defaults>
</compile_context>

<pallas_src>
import jax
import jax.numpy as jnp
from jax.experimental import pallas as pl
from jax.experimental.pallas import tpu as pltpu


def head_kernel(x_ref,        # [BHW, C]   bf16, resident activations
                pool_ref,     # [B, BHW]   f32,  resident per-batch pooling matrix
                w1_ref,       # [C, tk]    bf16, feature conv1 column chunk (BN-scaled)
                b1_ref,       # [1, tk]    f32,  folded BN bias chunk
                w3_ref,       # [C, tk]    bf16, attention conv1 column chunk (BN-scaled)
                b3_ref,       # [1, tk]    f32,  folded BN bias chunk
                w2_ref,       # [tk, F]    bf16, feature conv2 row chunk (BN-scaled)
                w4_ref,       # [1, tk]    f32,  attention 1024->1 conv weight chunk
                b2_ref,       # [1, F]     f32,  resident folded BN bias
                b4_ref,       # [1, 1]     f32,  resident attention conv bias
                feat_ref,     # [B, F]     f32 out (resident, written at finalize)
                att_ref,      # [BHW, 1]   f32 out (resident, written at finalize)
                f_acc,        # [BHW, F]   f32 scratch accumulator
                logit_acc):   # [BHW, 1]   f32 scratch accumulator
    k = pl.program_id(0)

    @pl.when(k == 0)
    def _init():
        f_acc[...] = jnp.zeros_like(f_acc)
        logit_acc[...] = jnp.zeros_like(logit_acc)

    x = x_ref[...]                                               # [BHW, C] bf16

    # ---- feature branch: conv1 chunk + folded BN + ReLU, then partial conv2 ----
    h = jnp.dot(x, w1_ref[...], preferred_element_type=jnp.float32)
    h = jnp.maximum(h + b1_ref[...], 0.0)                        # [BHW, tk] f32
    f_acc[...] += jnp.dot(h.astype(w2_ref.dtype), w2_ref[...],
                          preferred_element_type=jnp.float32)    # [BHW, F]

    # ---- attention branch: conv1 chunk + folded BN + ReLU, partial 1024->1 conv ----
    a = jnp.dot(x, w3_ref[...], preferred_element_type=jnp.float32)
    a = jnp.maximum(a + b3_ref[...], 0.0)                        # [BHW, tk] f32
    logit_acc[...] += jnp.sum(a * w4_ref[...], axis=-1, keepdims=True)  # [BHW, 1]

    @pl.when(k == pl.num_programs(0) - 1)
    def _finalize():
        att = jax.nn.sigmoid(logit_acc[...] + b4_ref[...])       # [BHW, 1]
        att_ref[...] = att
        f = f_acc[...] + b2_ref[...]                             # [BHW, F]
        weighted = f * att                                       # [BHW, F]
        # per-batch attention-weighted spatial sum via tiny pooling matmul
        feat_sum = jnp.dot(pool_ref[...], weighted,
                           preferred_element_type=jnp.float32)   # [B, F]
        eps = 1e-10
        inv_norm = jax.lax.rsqrt(
            jnp.sum(feat_sum * feat_sum, axis=-1, keepdims=True) + eps)
        feat_ref[...] = feat_sum * inv_norm


def dense121_head(x_nchw, params, *, tk=256):
    """x_nchw: [B, 1024, H, W] backbone feature map.
    Returns (feat [B, feat_dim], att [B, 1, H, W])."""
    (w1, b1, w3, b3, w2, w4, b2, b4) = params
    B, C, H, W = x_nchw.shape
    HW = H * W
    BHW = B * HW
    F = w2.shape[1]
    tk = min(tk, C)
    assert C % tk == 0, "channel dim must be divisible by the weight chunk size"
    nk = C // tk

    # NCHW -> channels-last rows, flattened + cast (cheap layout ops in XLA-land).
    x = jnp.transpose(x_nchw, (0, 2, 3, 1)).reshape(BHW, C).astype(jnp.bfloat16)
    # pool[b, r] = 1 if row r belongs to batch element b.
    pool = (jnp.arange(BHW)[None, :] // HW == jnp.arange(B)[:, None]).astype(jnp.float32)

    flops = 2 * BHW * C * (2 * C + F + 1) + 2 * B * BHW * F
    bytes_accessed = (x.size * 2
                      + (w1.size + w3.size + w2.size) * 2
                      + (b1.size + b3.size + b2.size + w4.size + b4.size + pool.size) * 4
                      + (B * F + BHW) * 4)

    feat, att_flat = pl.pallas_call(
        head_kernel,
        grid=(nk,),
        out_shape=(
            jax.ShapeDtypeStruct((B, F), jnp.float32),
            jax.ShapeDtypeStruct((BHW, 1), jnp.float32),
        ),
        in_specs=[
            pl.BlockSpec((BHW, C), lambda k: (0, 0)),    # x (resident)
            pl.BlockSpec((B, BHW), lambda k: (0, 0)),    # pooling matrix (resident)
            pl.BlockSpec((C, tk), lambda k: (0, k)),     # w1 column chunk (streamed)
            pl.BlockSpec((1, tk), lambda k: (0, k)),     # b1 chunk
            pl.BlockSpec((C, tk), lambda k: (0, k)),     # w3 column chunk (streamed)
            pl.BlockSpec((1, tk), lambda k: (0, k)),     # b3 chunk
            pl.BlockSpec((tk, F), lambda k: (k, 0)),     # w2 row chunk (streamed)
            pl.BlockSpec((1, tk), lambda k: (0, k)),     # w4 chunk
            pl.BlockSpec((1, F), lambda k: (0, 0)),      # b2 (resident)
            pl.BlockSpec((1, 1), lambda k: (0, 0)),      # b4 (resident)
        ],
        out_specs=(
            pl.BlockSpec((B, F), lambda k: (0, 0)),      # resident; written at finalize
            pl.BlockSpec((BHW, 1), lambda k: (0, 0)),    # resident; written at finalize
        ),
        scratch_shapes=[
            pltpu.VMEM((BHW, F), jnp.float32),
            pltpu.VMEM((BHW, 1), jnp.float32),
        ],
        compiler_params=pltpu.CompilerParams(
            dimension_semantics=("arbitrary",),          # reduction over weight chunks
            vmem_limit_bytes=32 << 20,
        ),
        cost_estimate=pl.CostEstimate(
            flops=flops,
            transcendentals=BHW,
            bytes_accessed=bytes_accessed,
        ),
    )(x, pool, w1, b1, w3, b3, w2, w4, b2, b4)

    att = att_flat.reshape(B, H, W)[:, None, :, :]
    return feat, att


def _fold_bn(conv_b, gamma, beta, mean, var, bn_eps=1e-5):
    scale = gamma / jnp.sqrt(var + bn_eps)
    bias = beta + (conv_b - mean) * scale
    return scale, bias


def init_params(key, c_in=1024, feat_dim=256):
    """Deterministic synthetic parameters matching the module's layer shapes.
    BN (eval) is folded into per-output-channel scale/bias; scales are folded
    into the conv weight columns offline."""
    ks = jax.random.split(key, 11)

    def conv_w(k, cin, cout):
        return (0.02 * jax.random.normal(k, (cin, cout))).astype(jnp.float32)

    def bn(k, c):
        k1, k2, k3, k4 = jax.random.split(k, 4)
        gamma = (1.0 + 0.1 * jax.random.normal(k1, (c,))).astype(jnp.float32)
        beta = (0.1 * jax.random.normal(k2, (c,))).astype(jnp.float32)
        mean = (0.1 * jax.random.normal(k3, (c,))).astype(jnp.float32)
        var = jax.random.uniform(k4, (c,), minval=0.5, maxval=1.5).astype(jnp.float32)
        return gamma, beta, mean, var

    # feature branch: conv(1024->1024)+BN, ReLU, conv(1024->feat)+BN
    w1 = conv_w(ks[0], c_in, c_in)
    cb1 = (0.02 * jax.random.normal(ks[1], (c_in,))).astype(jnp.float32)
    s1, b1 = _fold_bn(cb1, *bn(ks[2], c_in))
    w2 = conv_w(ks[3], c_in, feat_dim)
    cb2 = (0.02 * jax.random.normal(ks[4], (feat_dim,))).astype(jnp.float32)
    s2, b2 = _fold_bn(cb2, *bn(ks[5], feat_dim))

    # attention branch: conv(1024->1024)+BN, ReLU, conv(1024->1)
    w3 = conv_w(ks[6], c_in, c_in)
    cb3 = (0.02 * jax.random.normal(ks[7], (c_in,))).astype(jnp.float32)
    s3, b3 = _fold_bn(cb3, *bn(ks[8], c_in))
    w4 = conv_w(ks[9], c_in, 1)
    cb4 = (0.02 * jax.random.normal(ks[10], (1,))).astype(jnp.float32)

    # ---- offline folding for the kernel (BN scales into weight columns) ----
    w1f = (w1 * s1[None, :]).astype(jnp.bfloat16)          # [C, C]
    b1r = b1.reshape(1, -1).astype(jnp.float32)            # [1, C]
    w3f = (w3 * s3[None, :]).astype(jnp.bfloat16)          # [C, C]
    b3r = b3.reshape(1, -1).astype(jnp.float32)            # [1, C]
    w2f = (w2 * s2[None, :]).astype(jnp.bfloat16)          # [C, F]
    w4r = w4.reshape(1, c_in).astype(jnp.float32)          # [1, C] (VPU/XLU path, feeds sigmoid)
    b2r = b2.reshape(1, -1).astype(jnp.float32)            # [1, F]
    b4r = cb4.reshape(1, 1).astype(jnp.float32)            # [1, 1]
    return (w1f, b1r, w3f, b3r, w2f, w4r, b2r, b4r)


if __name__ == "__main__":
    key = jax.random.PRNGKey(0)
    k_x, k_p = jax.random.split(key)

    B, C_BACKBONE, H, W = 2, 1024, 4, 4   # backbone output feature map (small spatial)
    FEAT_DIM = 256

    x = jax.random.normal(k_x, (B, C_BACKBONE, H, W), dtype=jnp.float32)
    params = init_params(k_p, c_in=C_BACKBONE, feat_dim=FEAT_DIM)

    feat, att = dense121_head(x, params)
    jax.block_until_ready((feat, att))

    assert feat.shape == (B, FEAT_DIM)
    assert att.shape == (B, 1, H, W)
    assert bool(jnp.all(jnp.isfinite(feat))) and bool(jnp.all(jnp.isfinite(att)))
    print("KERNEL_OK")
</pallas_src>

<mosaic_0001>
module attributes {stable_mosaic.version = 11 : i64} {
  func.func @head_kernel(%arg0: i32, %arg1: memref<32x1024xbf16, #tpu.memory_space<vmem>>, %arg2: memref<2x32xf32, #tpu.memory_space<vmem>>, %arg3: memref<1024x256xbf16, #tpu.memory_space<vmem>>, %arg4: memref<1x256xf32, #tpu.memory_space<vmem>>, %arg5: memref<1024x256xbf16, #tpu.memory_space<vmem>>, %arg6: memref<1x256xf32, #tpu.memory_space<vmem>>, %arg7: memref<256x256xbf16, #tpu.memory_space<vmem>>, %arg8: memref<1x256xf32, #tpu.memory_space<vmem>>, %arg9: memref<1x256xf32, #tpu.memory_space<vmem>>, %arg10: memref<1x1xf32, #tpu.memory_space<vmem>>, %arg11: memref<2x256xf32, #tpu.memory_space<vmem>>, %arg12: memref<32x1xf32, #tpu.memory_space<vmem>>, %arg13: memref<32x256xf32, #tpu.memory_space<vmem>>, %arg14: memref<32x1xf32, #tpu.memory_space<vmem>>) attributes {dimension_semantics = [#tpu.dimension_semantics<arbitrary>], iteration_bounds = array<i64: 4>, scalar_prefetch = 0 : i64, scratch_operands = 2 : i64, tpu.core_type = #tpu.core_type<tc>, window_params = [{pipeline_mode = #tpu.pipeline_mode<synchronous>, transform_indices = @transform_0, window_bounds = array<i64: 32, 1024>}, {pipeline_mode = #tpu.pipeline_mode<synchronous>, transform_indices = @transform_1, window_bounds = array<i64: 2, 32>}, {transform_indices = @transform_2, window_bounds = array<i64: 1024, 256>}, {transform_indices = @transform_3, window_bounds = array<i64: 1, 256>}, {transform_indices = @transform_4, window_bounds = array<i64: 1024, 256>}, {transform_indices = @transform_5, window_bounds = array<i64: 1, 256>}, {transform_indices = @transform_6, window_bounds = array<i64: 256, 256>}, {transform_indices = @transform_7, window_bounds = array<i64: 1, 256>}, {pipeline_mode = #tpu.pipeline_mode<synchronous>, transform_indices = @transform_8, window_bounds = array<i64: 1, 256>}, {pipeline_mode = #tpu.pipeline_mode<synchronous>, transform_indices = @transform_9, window_bounds = array<i64: 1, 1>}, {pipeline_mode = #tpu.pipeline_mode<synchronous>, transform_indices = @transform_10, window_bounds = array<i64: 2, 256>}, {pipeline_mode = #tpu.pipeline_mode<synchronous>, transform_indices = @transform_11, window_bounds = array<i64: 32, 1>}]} {
    %c0_i32 = arith.constant 0 : i32
    %0 = arith.cmpi eq, %arg0, %c0_i32 : i32
    %1 = arith.extui %0 : i1 to i32
    %c0_i32_0 = arith.constant 0 : i32
    %2 = arith.cmpi ne, %1, %c0_i32_0 : i32
    scf.if %2 {
      %cst_28 = arith.constant 0.000000e+00 : f32
      %35 = vector.broadcast %cst_28 : f32 to vector<32x256xf32>
      %c0_29 = arith.constant 0 : index
      %c0_30 = arith.constant 0 : index
      %36 = vector.load %arg13[%c0_29, %c0_30] : memref<32x256xf32, #tpu.memory_space<vmem>>, vector<32x256xf32>
      tpu.vector_store %arg13[%c0_29, %c0_30], %35 {strides = array<i32>} : memref<32x256xf32, #tpu.memory_space<vmem>>, vector<32x256xf32>,
      %cst_31 = arith.constant 0.000000e+00 : f32
      %37 = vector.broadcast %cst_31 : f32 to vector<32x1xf32>
      %c0_32 = arith.constant 0 : index
      %c0_33 = arith.constant 0 : index
      %38 = vector.load %arg14[%c0_32, %c0_33] : memref<32x1xf32, #tpu.memory_space<vmem>>, vector<32x1xf32>
      tpu.vector_store %arg14[%c0_32, %c0_33], %37 {strides = array<i32>} : memref<32x1xf32, #tpu.memory_space<vmem>>, vector<32x1xf32>,
    } else {
    }
    %c0 = arith.constant 0 : index
    %c0_1 = arith.constant 0 : index
    %3 = vector.load %arg1[%c0, %c0_1] : memref<32x1024xbf16, #tpu.memory_space<vmem>>, vector<32x1024xbf16>
    %c0_2 = arith.constant 0 : index
    %c0_3 = arith.constant 0 : index
    %4 = vector.load %arg3[%c0_2, %c0_3] : memref<1024x256xbf16, #tpu.memory_space<vmem>>, vector<1024x256xbf16>
    %cst = arith.constant dense<0.000000e+00> : vector<32x256xf32>
    %5 = tpu.matmul %3, %4, %cst {dimension_numbers = #tpu.dot_dimension_numbers<[1], [0], [0], [1], [0, 0, 1, 1], [], []>} : vector<32x1024xbf16>, vector<1024x256xbf16>, vector<32x256xf32> -> vector<32x256xf32>
    %c0_4 = arith.constant 0 : index
    %c0_5 = arith.constant 0 : index
    %6 = vector.load %arg4[%c0_4, %c0_5] : memref<1x256xf32, #tpu.memory_space<vmem>>, vector<1x256xf32>
    %7 = vector.broadcast %6 : vector<1x256xf32> to vector<32x256xf32>
    %8 = arith.addf %5, %7 : vector<32x256xf32>
    %cst_6 = arith.constant 0.000000e+00 : f32
    %9 = vector.broadcast %cst_6 : f32 to vector<32x256xf32>
    %10 = arith.maximumf %8, %9 : vector<32x256xf32>
    %c0_7 = arith.constant 0 : index
    %c0_8 = arith.constant 0 : index
    %11 = vector.load %arg13[%c0_7, %c0_8] : memref<32x256xf32, #tpu.memory_space<vmem>>, vector<32x256xf32>
    %12 = arith.truncf %10 : vector<32x256xf32> to vector<32x256xbf16>
    %c0_9 = arith.constant 0 : index
    %c0_10 = arith.constant 0 : index
    %13 = vector.load %arg7[%c0_9, %c0_10] : memref<256x256xbf16, #tpu.memory_space<vmem>>, vector<256x256xbf16>
    %cst_11 = arith.constant dense<0.000000e+00> : vector<32x256xf32>
    %14 = tpu.matmul %12, %13, %cst_11 {dimension_numbers = #tpu.dot_dimension_numbers<[1], [0], [0], [1], [0, 0, 1, 1], [], []>} : vector<32x256xbf16>, vector<256x256xbf16>, vector<32x256xf32> -> vector<32x256xf32>
    %15 = arith.addf %11, %14 : vector<32x256xf32>
    %c0_12 = arith.constant 0 : index
    %c0_13 = arith.constant 0 : index
    %16 = vector.load %arg13[%c0_12, %c0_13] : memref<32x256xf32, #tpu.memory_space<vmem>>, vector<32x256xf32>
    tpu.vector_store %arg13[%c0_12, %c0_13], %15 {strides = array<i32>} : memref<32x256xf32, #tpu.memory_space<vmem>>, vector<32x256xf32>,
    %c0_14 = arith.constant 0 : index
    %c0_15 = arith.constant 0 : index
    %17 = vector.load %arg5[%c0_14, %c0_15] : memref<1024x256xbf16, #tpu.memory_space<vmem>>, vector<1024x256xbf16>
    %cst_16 = arith.constant dense<0.000000e+00> : vector<32x256xf32>
    %18 = tpu.matmul %3, %17, %cst_16 {dimension_numbers = #tpu.dot_dimension_numbers<[1], [0], [0], [1], [0, 0, 1, 1], [], []>} : vector<32x1024xbf16>, vector<1024x256xbf16>, vector<32x256xf32> -> vector<32x256xf32>
    %c0_17 = arith.constant 0 : index
    %c0_18 = arith.constant 0 : index
    %19 = vector.load %arg6[%c0_17, %c0_18] : memref<1x256xf32, #tpu.memory_space<vmem>>, vector<1x256xf32>
    %20 = vector.broadcast %19 : vector<1x256xf32> to vector<32x256xf32>
    %21 = arith.addf %18, %20 : vector<32x256xf32>
    %cst_19 = arith.constant 0.000000e+00 : f32
    %22 = vector.broadcast %cst_19 : f32 to vector<32x256xf32>
    %23 = arith.maximumf %21, %22 : vector<32x256xf32>
    %c0_20 = arith.constant 0 : index
    %c0_21 = arith.constant 0 : index
    %24 = vector.load %arg14[%c0_20, %c0_21] : memref<32x1xf32, #tpu.memory_space<vmem>>, vector<32x1xf32>
    %c0_22 = arith.constant 0 : index
    %c0_23 = arith.constant 0 : index
    %25 = vector.load %arg8[%c0_22, %c0_23] : memref<1x256xf32, #tpu.memory_space<vmem>>, vector<1x256xf32>
    %26 = vector.broadcast %25 : vector<1x256xf32> to vector<32x256xf32>
    %27 = arith.mulf %23, %26 : vector<32x256xf32>
    %cst_24 = arith.constant dense<0.000000e+00> : vector<32xf32>
    %28 = vector.multi_reduction <add>, %27, %cst_24 [1] : vector<32x256xf32> to vector<32xf32>
    %29 = vector.shape_cast %28 : vector<32xf32> to vector<32x1xf32>
    %30 = arith.addf %24, %29 : vector<32x1xf32>
    %c0_25 = arith.constant 0 : index
    %c0_26 = arith.constant 0 : index
    %31 = vector.load %arg14[%c0_25, %c0_26] : memref<32x1xf32, #tpu.memory_space<vmem>>, vector<32x1xf32>
    tpu.vector_store %arg14[%c0_25, %c0_26], %30 {strides = array<i32>} : memref<32x1xf32, #tpu.memory_space<vmem>>, vector<32x1xf32>,
    %c3_i32 = arith.constant 3 : i32
    %32 = arith.cmpi eq, %arg0, %c3_i32 : i32
    %33 = arith.extui %32 : i1 to i32
    %c0_i32_27 = arith.constant 0 : i32
    %34 = arith.cmpi ne, %33, %c0_i32_27 : i32
    scf.if %34 {
      %c0_28 = arith.constant 0 : index
      %c0_29 = arith.constant 0 : index
      %35 = vector.load %arg14[%c0_28, %c0_29] : memref<32x1xf32, #tpu.memory_space<vmem>>, vector<32x1xf32>
      %c0_30 = arith.constant 0 : index
      %c0_31 = arith.constant 0 : index
      %36 = vector.load %arg10[%c0_30, %c0_31] : memref<1x1xf32, #tpu.memory_space<vmem>>, vector<1x1xf32>
      %37 = vector.broadcast %36 : vector<1x1xf32> to vector<32x1xf32>
      %38 = arith.addf %35, %37 : vector<32x1xf32>
      %39 = arith.negf %38 : vector<32x1xf32>
      %40 = math.exp %39 : vector<32x1xf32>
      %cst_32 = arith.constant 1.000000e+00 : f32
      %41 = vector.broadcast %cst_32 : f32 to vector<32x1xf32>
      %42 = arith.addf %41, %40 : vector<32x1xf32>
      %43 = arith.divf %41, %42 : vector<32x1xf32>
      %c0_33 = arith.constant 0 : index
      %c0_34 = arith.constant 0 : index
      %44 = vector.load %arg12[%c0_33, %c0_34] : memref<32x1xf32, #tpu.memory_space<vmem>>, vector<32x1xf32>
      tpu.vector_store %arg12[%c0_33, %c0_34], %43 {strides = array<i32>} : memref<32x1xf32, #tpu.memory_space<vmem>>, vector<32x1xf32>,
      %c0_35 = arith.constant 0 : index
      %c0_36 = arith.constant 0 : index
      %45 = vector.load %arg13[%c0_35, %c0_36] : memref<32x256xf32, #tpu.memory_space<vmem>>, vector<32x256xf32>
      %c0_37 = arith.constant 0 : index
      %c0_38 = arith.constant 0 : index
      %46 = vector.load %arg9[%c0_37, %c0_38] : memref<1x256xf32, #tpu.memory_space<vmem>>, vector<1x256xf32>
      %47 = vector.broadcast %46 : vector<1x256xf32> to vector<32x256xf32>
      %48 = arith.addf %45, %47 : vector<32x256xf32>
      %49 = vector.broadcast %43 : vector<32x1xf32> to vector<32x256xf32>
      %50 = arith.mulf %48, %49 : vector<32x256xf32>
      %c0_39 = arith.constant 0 : index
      %c0_40 = arith.constant 0 : index
      %51 = vector.load %arg2[%c0_39, %c0_40] : memref<2x32xf32, #tpu.memory_space<vmem>>, vector<2x32xf32>
      %cst_41 = arith.constant dense<0.000000e+00> : vector<2x256xf32>
      %52 = tpu.matmul %51, %50, %cst_41 {dimension_numbers = #tpu.dot_dimension_numbers<[1], [0], [0], [1], [0, 0, 1, 1], [], []>} : vector<2x32xf32>, vector<32x256xf32>, vector<2x256xf32> -> vector<2x256xf32>
      %53 = arith.mulf %52, %52 : vector<2x256xf32>
      %cst_42 = arith.constant dense<0.000000e+00> : vector<2xf32>
      %54 = vector.multi_reduction <add>, %53, %cst_42 [1] : vector<2x256xf32> to vector<2xf32>
      %55 = vector.shape_cast %54 : vector<2xf32> to vector<2x1xf32>
      %cst_43 = arith.constant 1.000000e-10 : f32
      %56 = vector.broadcast %cst_43 : f32 to vector<2x1xf32>
      %57 = arith.addf %55, %56 : vector<2x1xf32>
      %58 = math.rsqrt %57 : vector<2x1xf32>
      %59 = vector.broadcast %58 : vector<2x1xf32> to vector<2x256xf32>
      %60 = arith.mulf %52, %59 : vector<2x256xf32>
      %c0_44 = arith.constant 0 : index
      %c0_45 = arith.constant 0 : index
      %61 = vector.load %arg11[%c0_44, %c0_45] : memref<2x256xf32, #tpu.memory_space<vmem>>, vector<2x256xf32>
      tpu.vector_store %arg11[%c0_44, %c0_45], %60 {strides = array<i32>} : memref<2x256xf32, #tpu.memory_space<vmem>>, vector<2x256xf32>,
    } else {
    }
    return
  }
  func.func @transform_0(%arg0: i32) -> (i32, i32) {
    %c0_i32 = arith.constant 0 : i32
    %c0_i32_0 = arith.constant 0 : i32
    %c0_i32_1 = arith.constant 0 : i32
    return %c0_i32, %c0_i32_0 : i32, i32
  }
  func.func @transform_1(%arg0: i32) -> (i32, i32) {
    %c0_i32 = arith.constant 0 : i32
    %c0_i32_0 = arith.constant 0 : i32
    %c0_i32_1 = arith.constant 0 : i32
    return %c0_i32, %c0_i32_0 : i32, i32
  }
  func.func @transform_2(%arg0: i32) -> (i32, i32) {
    %c0_i32 = arith.constant 0 : i32
    %c0_i32_0 = arith.constant 0 : i32
    return %c0_i32, %arg0 : i32, i32
  }
  func.func @transform_3(%arg0: i32) -> (i32, i32) {
    %c0_i32 = arith.constant 0 : i32
    %c0_i32_0 = arith.constant 0 : i32
    return %c0_i32, %arg0 : i32, i32
  }
  func.func @transform_4(%arg0: i32) -> (i32, i32) {
    %c0_i32 = arith.constant 0 : i32
    %c0_i32_0 = arith.constant 0 : i32
    return %c0_i32, %arg0 : i32, i32
  }
  func.func @transform_5(%arg0: i32) -> (i32, i32) {
    %c0_i32 = arith.constant 0 : i32
    %c0_i32_0 = arith.constant 0 : i32
    return %c0_i32, %arg0 : i32, i32
  }
  func.func @transform_6(%arg0: i32) -> (i32, i32) {
    %c0_i32 = arith.constant 0 : i32
    %c0_i32_0 = arith.constant 0 : i32
    return %arg0, %c0_i32 : i32, i32
  }
  func.func @transform_7(%arg0: i32) -> (i32, i32) {
    %c0_i32 = arith.constant 0 : i32
    %c0_i32_0 = arith.constant 0 : i32
    return %c0_i32, %arg0 : i32, i32
  }
  func.func @transform_8(%arg0: i32) -> (i32, i32) {
    %c0_i32 = arith.constant 0 : i32
    %c0_i32_0 = arith.constant 0 : i32
    %c0_i32_1 = arith.constant 0 : i32
    return %c0_i32, %c0_i32_0 : i32, i32
  }
  func.func @transform_9(%arg0: i32) -> (i32, i32) {
    %c0_i32 = arith.constant 0 : i32
    %c0_i32_0 = arith.constant 0 : i32
    %c0_i32_1 = arith.constant 0 : i32
    return %c0_i32, %c0_i32_0 : i32, i32
  }
  func.func @transform_10(%arg0: i32) -> (i32, i32) {
    %c0_i32 = arith.constant 0 : i32
    %c0_i32_0 = arith.constant 0 : i32
    %c0_i32_1 = arith.constant 0 : i32
    return %c0_i32, %c0_i32_0 : i32, i32
  }
  func.func @transform_11(%arg0: i32) -> (i32, i32) {
    %c0_i32 = arith.constant 0 : i32
    %c0_i32_0 = arith.constant 0 : i32
    %c0_i32_1 = arith.constant 0 : i32
    return %c0_i32, %c0_i32_0 : i32, i32
  }
}

</mosaic_0001>

<llo_original>
// kernel: tpu_custom_call.1
$region0: #{tpu_custom_call.1}
  #allocation0 [shape = 'u32[]', space=smem, size = 0x4, offset = 0x4, fixed_abs, tag = 'smem constant byte address 0x4 - core index']
  #allocation1 [shape = 'u32[144,128]{1,0:T(1,128)}', space=vmem, size = 0x12000, scoped, tag = 'internal scratch']
  #allocation2 [shape = 'f32[32,256]{1,0:T(8,128)}', space=vmem, size = 0x8000, scoped, tag = 'scratch operand']
  #allocation3 [shape = 'f32[32,1]{1,0:T(8,128)}', space=vmem, size = 0x4000, scoped, tag = 'scratch operand']
  #allocation4 [shape = 'f32[1,1]{1,0:T(1,128)S(1)}', space=vmem, size = 0x200, scoped, tag = 'scoped memory for tpu_custom_call.1']
  %s0 = inlined_call_operand.hbm [shape: bf16[32,1024], index: 0, kind: input, shape index: {}]
  %s1 = inlined_call_operand.hbm [shape: f32[2,32], index: 1, kind: input, shape index: {}]
  %s2 = inlined_call_operand.hbm [shape: bf16[1024,1024], index: 2, kind: input, shape index: {}]
  %s3 = inlined_call_operand.hbm [shape: f32[1,1024], index: 3, kind: input, shape index: {}]
  %s4 = inlined_call_operand.hbm [shape: bf16[1024,1024], index: 4, kind: input, shape index: {}]
  %s5 = inlined_call_operand.hbm [shape: f32[1,1024], index: 5, kind: input, shape index: {}]
  %s6 = inlined_call_operand.hbm [shape: bf16[1024,256], index: 6, kind: input, shape index: {}]
  %s7 = inlined_call_operand.hbm [shape: f32[1,1024], index: 7, kind: input, shape index: {}]
  %s8 = inlined_call_operand.hbm [shape: f32[1,256], index: 8, kind: input, shape index: {}]
  %s9 = inlined_call_operand.<no memory space> [shape: f32[1,1], index: 9, kind: input, shape index: {}]
  %s10 = inlined_call_operand.hbm [shape: f32[2,256], index: 10, kind: output, shape index: {0}]
  %s11 = inlined_call_operand.vmem [shape: f32[32,1], index: 11, kind: output, shape index: {1}]
  %12 = xla_tuple %s10, %s11
  %s13 = sld [smem:[#allocation0]]
  $region125: #{tpu_custom_call.1} parent=0
    _
  %s15 = ssub.s32 1, %s13
  %s16 = scalar_select 0, %s15, %s13
  %v17 = vstv %s9
  %18 = vst [vmem:[#allocation4] sm:$0x1] %v17
  $region1: #{tpu_custom_call.1} parent=0
    #allocation5 [shape = 'u8[65536]{0}', space=vmem, size = 0x10000, scoped, tag = 'input window, operand 0, single buffered']
    #allocation6 [shape = 's32[2]{0}', space=sflag, size = 0x8, scoped, tag = 'scoped memory for tpu_custom_call.1']
    #allocation7 [shape = 's32[2]{0}', space=sflag, size = 0x8, scoped, tag = 'scoped memory for tpu_custom_call.1']
    #allocation8 [shape = 'u8[1024]{0}', space=vmem, size = 0x400, scoped, tag = 'input window, operand 1, single buffered']
    #allocation9 [shape = 's32[1]{0}', space=sflag, size = 0x4, scoped, tag = 'scoped memory for tpu_custom_call.1']
    #allocation10 [shape = 'u8[1048576]{0}', space=vmem, size = 0x100000, scoped, tag = 'input window, operand 2']
    #allocation11 [shape = 'u8[2048]{0}', space=vmem, size = 0x800, scoped, tag = 'input window, operand 3']
    #allocation12 [shape = 'u8[1048576]{0}', space=vmem, size = 0x100000, scoped, tag = 'input window, operand 4']
    #allocation13 [shape = 'u8[2048]{0}', space=vmem, size = 0x800, scoped, tag = 'input window, operand 5']
    #allocation14 [shape = 'u8[262144]{0}', space=vmem, size = 0x40000, scoped, tag = 'input window, operand 6']
    #allocation15 [shape = 'u8[2048]{0}', space=vmem, size = 0x800, scoped, tag = 'input window, operand 7']
    #allocation16 [shape = 'u8[1024]{0}', space=vmem, size = 0x400, scoped, tag = 'input window, operand 8, single buffered']
    #allocation17 [shape = 'u8[2048]{0}', space=vmem, size = 0x800, scoped, tag = 'output window, operand 0, single buffered']
    %19 = vsyncpa [#allocation6], 0
    %20 = vsyncpa [#allocation9], 0
    %21 = vsyncpa [#allocation7], 0
    loop: start=0, step=1, limit=6
    $region2: #{tpu_custom_call.1} parent=1 // loop_pre_header
      _
    $region3: #{tpu_custom_call.1} parent=1 // loop_header
      %s23 = sphi 0, %s27
      %p24 = scmp.ge.s32.totalorder %s23, 6
      %s31 = sphi 0, %s31
      %s33 = sphi 0, %s31
      %s34 = sphi 0, %s33
      %s48 = sphi 0, %s34
      %s52 = sphi 0, %s52
      %s54 = sphi 0, %s52
      %s55 = sphi 0, %s54
      %s69 = sphi 0, %s55
      %s75 = sphi 0, %s77
      %s78 = sphi 0, %s75
      %s79 = sphi 0, %s78
      %s95 = sphi 0, %s79
      %s101 = sphi 0, %s103
      %s104 = sphi 0, %s101
      %s105 = sphi 0, %s104
      %s121 = sphi 0, %s105
      %s127 = sphi 0, %s129
      %s130 = sphi 0, %s127
      %s131 = sphi 0, %s130
      %s147 = sphi 0, %s131
      %s153 = sphi 0, %s155
      %s156 = sphi 0, %s153
      %s157 = sphi 0, %s156
      %s173 = sphi 0, %s157
      %s179 = sphi 0, %s181
      %s182 = sphi 0, %s179
      %s183 = sphi 0, %s182
      %s199 = sphi 0, %s183
      %s205 = sphi 0, %s207
      %s208 = sphi 0, %s205
      %s209 = sphi 0, %s208
      %s225 = sphi 0, %s209
      %s229 = sphi 0, %s229
      %s231 = sphi 0, %s229
      %s232 = sphi 0, %s231
      %s246 = sphi 0, %s232
      %s250 = sphi 0, %s250
      %s252 = sphi 0, %s250
      %s253 = sphi 0, %s252
      %s267 = sphi 0, %s253
      %s271 = sphi 0, %s271
      %s273 = sphi 0, %s271
      %s274 = sphi 0, %s273
      %s288 = sphi 0, %s274
      %s292 = sphi 0, %s292
      %s294 = sphi 0, %s292
      %s295 = sphi 0, %s294
      %s309 = sphi 0, %s295
    $region4: #{tpu_custom_call.1} parent=1 // loop_header_branch
      %26 = sbr.rel (%p24) target = $region8
    $region5: #{tpu_custom_call.1} parent=1 // loop_body
      %s28 = ssub.s32 %s23, 1
      %s29 = ssub.s32 %s23, 2
      %s30 = sadd.s32 %s23, 1
      %s32 = sadd.s32 %s31, 1
      %p35 = scmp.eq.s32.totalorder %s23, 3
      %p36 = scmp.ne.s32.totalorder %s31, %s33
      %p37 = scmp.eq.s32.totalorder %s23, 0
      %p38 = por %p36, %p37
      %p39 = scmp.ne.s32.totalorder %s31, %s33
      %p40 = scmp.eq.s32.totalorder %s28, 3
      %p41 = por %p39, %p40
      %p42 = scmp.ne.s32.totalorder %s33, %s34
      %p43 = scmp.eq.s32.totalorder %s28, 0
      %p44 = por %p42, %p43
      %p45 = scmp.ne.s32.totalorder %s33, %s34
      %p46 = scmp.eq.s32.totalorder %s29, 3
      %p47 = por %p45, %p46
      %p49 = scmp.ne.s32.totalorder %s34, %s48
      %p50 = scmp.eq.s32.totalorder %s29, 0
      %p51 = por %p49, %p50
      %s53 = sadd.s32 %s52, 1
      %p56 = scmp.eq.s32.totalorder %s23, 3
      %p57 = scmp.ne.s32.totalorder %s52, %s54
      %p58 = scmp.eq.s32.totalorder %s23, 0
      %p59 = por %p57, %p58
      %p60 = scmp.ne.s32.totalorder %s52, %s54
      %p61 = scmp.eq.s32.totalorder %s28, 3
      %p62 = por %p60, %p61
      %p63 = scmp.ne.s32.totalorder %s54, %s55
      %p64 = scmp.eq.s32.totalorder %s28, 0
      %p65 = por %p63, %p64
      %p66 = scmp.ne.s32.totalorder %s54, %s55
      %p67 = scmp.eq.s32.totalorder %s29, 3
      %p68 = por %p66, %p67
      %p70 = scmp.ne.s32.totalorder %s55, %s69
      %p71 = scmp.eq.s32.totalorder %s29, 0
      %p72 = por %p70, %p71
      %s73 = ssub.s32 %s23, %s30
      %p74 = scmp.eq.s32.totalorder %s73, 0
      %s76 = sadd.s32 %s75, 1
      %s77 = scalar_select %p74, %s75, %s76
      %p80 = pneg %p74
      %p81 = scmp.eq.s32.totalorder %s23, 3
      %p82 = por %p80, %p81
      %p83 = scmp.ne.s32.totalorder %s75, %s78
      %p84 = scmp.eq.s32.totalorder %s23, 0
      %p85 = por %p83, %p84
      %p86 = scmp.ne.s32.totalorder %s75, %s78
      %p87 = scmp.eq.s32.totalorder %s28, 3
      %p88 = por %p86, %p87
      %p89 = scmp.ne.s32.totalorder %s78, %s79
      %p90 = scmp.eq.s32.totalorder %s28, 0
      %p91 = por %p89, %p90
      %p92 = scmp.ne.s32.totalorder %s78, %s79
      %p93 = scmp.eq.s32.totalorder %s29, 3
      %p94 = por %p92, %p93
      %p96 = scmp.ne.s32.totalorder %s79, %s95
      %p97 = scmp.eq.s32.totalorder %s29, 0
      %p98 = por %p96, %p97
      %s99 = ssub.s32 %s23, %s30
      %p100 = scmp.eq.s32.totalorder %s99, 0
      %s102 = sadd.s32 %s101, 1
      %s103 = scalar_select %p100, %s101, %s102
      %p106 = pneg %p100
      %p107 = scmp.eq.s32.totalorder %s23, 3
      %p108 = por %p106, %p107
      %p109 = scmp.ne.s32.totalorder %s101, %s104
      %p110 = scmp.eq.s32.totalorder %s23, 0
      %p111 = por %p109, %p110
      %p112 = scmp.ne.s32.totalorder %s101, %s104
      %p113 = scmp.eq.s32.totalorder %s28, 3
      %p114 = por %p112, %p113
      %p115 = scmp.ne.s32.totalorder %s104, %s105
      %p116 = scmp.eq.s32.totalorder %s28, 0
      %p117 = por %p115, %p116
      %p118 = scmp.ne.s32.totalorder %s104, %s105
      %p119 = scmp.eq.s32.totalorder %s29, 3
      %p120 = por %p118, %p119
      %p122 = scmp.ne.s32.totalorder %s105, %s121
      %p123 = scmp.eq.s32.totalorder %s29, 0
      %p124 = por %p122, %p123
      %s125 = ssub.s32 %s23, %s30
      %p126 = scmp.eq.s32.totalorder %s125, 0
      %s128 = sadd.s32 %s127, 1
      %s129 = scalar_select %p126, %s127, %s128
      %p132 = pneg %p126
      %p133 = scmp.eq.s32.totalorder %s23, 3
      %p134 = por %p132, %p133
      %p135 = scmp.ne.s32.totalorder %s127, %s130
      %p136 = scmp.eq.s32.totalorder %s23, 0
      %p137 = por %p135, %p136
      %p138 = scmp.ne.s32.totalorder %s127, %s130
      %p139 = scmp.eq.s32.totalorder %s28, 3
      %p140 = por %p138, %p139
      %p141 = scmp.ne.s32.totalorder %s130, %s131
      %p142 = scmp.eq.s32.totalorder %s28, 0
      %p143 = por %p141, %p142
      %p144 = scmp.ne.s32.totalorder %s130, %s131
      %p145 = scmp.eq.s32.totalorder %s29, 3
      %p146 = por %p144, %p145
      %p148 = scmp.ne.s32.totalorder %s131, %s147
      %p149 = scmp.eq.s32.totalorder %s29, 0
      %p150 = por %p148, %p149
      %s151 = ssub.s32 %s23, %s30
      %p152 = scmp.eq.s32.totalorder %s151, 0
      %s154 = sadd.s32 %s153, 1
      %s155 = scalar_select %p152, %s153, %s154
      %p158 = pneg %p152
      %p159 = scmp.eq.s32.totalorder %s23, 3
      %p160 = por %p158, %p159
      %p161 = scmp.ne.s32.totalorder %s153, %s156
      %p162 = scmp.eq.s32.totalorder %s23, 0
      %p163 = por %p161, %p162
      %p164 = scmp.ne.s32.totalorder %s153, %s156
      %p165 = scmp.eq.s32.totalorder %s28, 3
      %p166 = por %p164, %p165
      %p167 = scmp.ne.s32.totalorder %s156, %s157
      %p168 = scmp.eq.s32.totalorder %s28, 0
      %p169 = por %p167, %p168
      %p170 = scmp.ne.s32.totalorder %s156, %s157
      %p171 = scmp.eq.s32.totalorder %s29, 3
      %p172 = por %p170, %p171
      %p174 = scmp.ne.s32.totalorder %s157, %s173
      %p175 = scmp.eq.s32.totalorder %s29, 0
      %p176 = por %p174, %p175
      %s177 = ssub.s32 %s23, %s30
      %p178 = scmp.eq.s32.totalorder %s177, 0
      %s180 = sadd.s32 %s179, 1
      %s181 = scalar_select %p178, %s179, %s180
      %p184 = pneg %p178
      %p185 = scmp.eq.s32.totalorder %s23, 3
      %p186 = por %p184, %p185
      %p187 = scmp.ne.s32.totalorder %s179, %s182
      %p188 = scmp.eq.s32.totalorder %s23, 0
      %p189 = por %p187, %p188
      %p190 = scmp.ne.s32.totalorder %s179, %s182
      %p191 = scmp.eq.s32.totalorder %s28, 3
      %p192 = por %p190, %p191
      %p193 = scmp.ne.s32.totalorder %s182, %s183
      %p194 = scmp.eq.s32.totalorder %s28, 0
      %p195 = por %p193, %p194
      %p196 = scmp.ne.s32.totalorder %s182, %s183
      %p197 = scmp.eq.s32.totalorder %s29, 3
      %p198 = por %p196, %p197
      %p200 = scmp.ne.s32.totalorder %s183, %s199
      %p201 = scmp.eq.s32.totalorder %s29, 0
      %p202 = por %p200, %p201
      %s203 = ssub.s32 %s23, %s30
      %p204 = scmp.eq.s32.totalorder %s203, 0
      %s206 = sadd.s32 %s205, 1
      %s207 = scalar_select %p204, %s205, %s206
      %p210 = pneg %p204
      %p211 = scmp.eq.s32.totalorder %s23, 3
      %p212 = por %p210, %p211
      %p213 = scmp.ne.s32.totalorder %s205, %s208
      %p214 = scmp.eq.s32.totalorder %s23, 0
      %p215 = por %p213, %p214
      %p216 = scmp.ne.s32.totalorder %s205, %s208
      %p217 = scmp.eq.s32.totalorder %s28, 3
      %p218 = por %p216, %p217
      %p219 = scmp.ne.s32.totalorder %s208, %s209
      %p220 = scmp.eq.s32.totalorder %s28, 0
      %p221 = por %p219, %p220
      %p222 = scmp.ne.s32.totalorder %s208, %s209
      %p223 = scmp.eq.s32.totalorder %s29, 3
      %p224 = por %p222, %p223
      %p226 = scmp.ne.s32.totalorder %s209, %s225
      %p227 = scmp.eq.s32.totalorder %s29, 0
      %p228 = por %p226, %p227
      %s230 = sadd.s32 %s229, 1
      %p233 = scmp.eq.s32.totalorder %s23, 3
      %p234 = scmp.ne.s32.totalorder %s229, %s231
      %p235 = scmp.eq.s32.totalorder %s23, 0
      %p236 = por %p234, %p235
      %p237 = scmp.ne.s32.totalorder %s229, %s231
      %p238 = scmp.eq.s32.totalorder %s28, 3
      %p239 = por %p237, %p238
      %p240 = scmp.ne.s32.totalorder %s231, %s232
      %p241 = scmp.eq.s32.totalorder %s28, 0
      %p242 = por %p240, %p241
      %p243 = scmp.ne.s32.totalorder %s231, %s232
      %p244 = scmp.eq.s32.totalorder %s29, 3
      %p245 = por %p243, %p244
      %p247 = scmp.ne.s32.totalorder %s232, %s246
      %p248 = scmp.eq.s32.totalorder %s29, 0
      %p249 = por %p247, %p248
      %s251 = sadd.s32 %s250, 1
      %p254 = scmp.eq.s32.totalorder %s23, 3
      %p255 = scmp.ne.s32.totalorder %s250, %s252
      %p256 = scmp.eq.s32.totalorder %s23, 0
      %p257 = por %p255, %p256
      %p258 = scmp.ne.s32.totalorder %s250, %s252
      %p259 = scmp.eq.s32.totalorder %s28, 3
      %p260 = por %p258, %p259
      %p261 = scmp.ne.s32.totalorder %s252, %s253
      %p262 = scmp.eq.s32.totalorder %s28, 0
      %p263 = por %p261, %p262
      %p264 = scmp.ne.s32.totalorder %s252, %s253
      %p265 = scmp.eq.s32.totalorder %s29, 3
      %p266 = por %p264, %p265
      %p268 = scmp.ne.s32.totalorder %s253, %s267
      %p269 = scmp.eq.s32.totalorder %s29, 0
      %p270 = por %p268, %p269
      %s272 = sadd.s32 %s271, 1
      %p275 = scmp.eq.s32.totalorder %s23, 3
      %p276 = scmp.ne.s32.totalorder %s271, %s273
      %p277 = scmp.eq.s32.totalorder %s23, 0
      %p278 = por %p276, %p277
      %p279 = scmp.ne.s32.totalorder %s271, %s273
      %p280 = scmp.eq.s32.totalorder %s28, 3
      %p281 = por %p279, %p280
      %p282 = scmp.ne.s32.totalorder %s273, %s274
      %p283 = scmp.eq.s32.totalorder %s28, 0
      %p284 = por %p282, %p283
      %p285 = scmp.ne.s32.totalorder %s273, %s274
      %p286 = scmp.eq.s32.totalorder %s29, 3
      %p287 = por %p285, %p286
      %p289 = scmp.ne.s32.totalorder %s274, %s288
      %p290 = scmp.eq.s32.totalorder %s29, 0
      %p291 = por %p289, %p290
      %s293 = sadd.s32 %s292, 1
      %p296 = scmp.eq.s32.totalorder %s23, 3
      %p297 = scmp.ne.s32.totalorder %s292, %s294
      %p298 = scmp.eq.s32.totalorder %s23, 0
      %p299 = por %p297, %p298
      %p300 = scmp.ne.s32.totalorder %s292, %s294
      %p301 = scmp.eq.s32.totalorder %s28, 3
      %p302 = por %p300, %p301
      %p303 = scmp.ne.s32.totalorder %s294, %s295
      %p304 = scmp.eq.s32.totalorder %s28, 0
      %p305 = por %p303, %p304
      %p306 = scmp.ne.s32.totalorder %s294, %s295
      %p307 = scmp.eq.s32.totalorder %s29, 3
      %p308 = por %p306, %p307
      %p310 = scmp.ne.s32.totalorder %s295, %s309
      %p311 = scmp.eq.s32.totalorder %s29, 0
      %p312 = por %p310, %p311
      %p313 = scmp.le.s32.totalorder 1, %s23
      %p314 = scmp.lt.s32.totalorder %s23, 5
      %p315 = pnand %p313, %p314
      %p316 = pneg %p315
      // Predicated region
      $region9: #{tpu_custom_call.1} parent=5 // pred_check
        _
      $region10: #{tpu_custom_call.1} parent=5 // pred_check_branch
        %318 = sbr.rel (%p315) target = $region12
      $region11: #{tpu_custom_call.1} parent=5 // pred_region
        %s319 = ssub.s32 %s23, 1
        // Predicated region
        $region13: #{tpu_custom_call.1} parent=11 // pred_check
          %p320 = pneg %p44
        $region14: #{tpu_custom_call.1} parent=11 // pred_check_branch
          %322 = sbr.rel (%p320) target = $region16
        $region15: #{tpu_custom_call.1} parent=11 // pred_region
          %s324 = ssub.s32 2048, 2048
          %325 = vsyncadd [#allocation6], %s324
          %s326 = sshll.u32 [#allocation5], 4
          %s327 = int_to_ptr.vmem [resolvable:$true] %s326
          %332 = dma.hbm_to_vmem [thread:$0]  %s0, 2048, %s327, [#allocation6], 512, 512, 32
        $region16: #{tpu_custom_call.1} parent=11 // pred_fallthru
          _
        // Predicated region
        $region17: #{tpu_custom_call.1} parent=11 // pred_check
          %p333 = pneg %p65
        $region18: #{tpu_custom_call.1} parent=11 // pred_check_branch
          %335 = sbr.rel (%p333) target = $region20
        $region19: #{tpu_custom_call.1} parent=11 // pred_region
          %s337 = ssub.s32 32, 32
          %338 = vsyncadd [#allocation9], %s337
          %s340 = sshll.u32 [#allocation8], 4
          %s341 = int_to_ptr.vmem [resolvable:$true] %s340
          %343 = dma.hbm_to_vmem [thread:$0]  %s1, 32, %s341, [#allocation9]
        $region20: #{tpu_custom_call.1} parent=11 // pred_fallthru
          _
        // Predicated region
        $region21: #{tpu_custom_call.1} parent=11 // pred_check
          %p344 = pneg %p242
        $region22: #{tpu_custom_call.1} parent=11 // pred_check_branch
          %346 = sbr.rel (%p344) target = $region24
        $region23: #{tpu_custom_call.1} parent=11 // pred_region
          %s348 = ssub.s32 32, 32
          %349 = vsyncadd [#allocation9], %s348
          %s351 = sshll.u32 [#allocation16], 4
          %s352 = int_to_ptr.vmem [resolvable:$true] %s351
          %354 = dma.hbm_to_vmem [thread:$0]  %s8, 32, %s352, [#allocation9]
        $region24: #{tpu_custom_call.1} parent=11 // pred_fallthru
          _
        // Predicated region
        $region25: #{tpu_custom_call.1} parent=11 // pred_check
          %p355 = pneg %p263
        $region26: #{tpu_custom_call.1} parent=11 // pred_check_branch
          %357 = sbr.rel (%p355) target = $region28
        $region27: #{tpu_custom_call.1} parent=11 // pred_region
          _
        $region28: #{tpu_custom_call.1} parent=11 // pred_fallthru
          _
      $region12: #{tpu_custom_call.1} parent=5 // pred_fallthru
        _
      %p358 = scmp.lt.s32.totalorder %s23, 4
      // Predicated region
      $region29: #{tpu_custom_call.1} parent=5 // pred_check
        %p359 = pneg %p358
      $region30: #{tpu_custom_call.1} parent=5 // pred_check_branch
        %361 = sbr.rel (%p359) target = $region32
      $region31: #{tpu_custom_call.1} parent=5 // pred_region
        // Predicated region
        $region33: #{tpu_custom_call.1} parent=31 // pred_check
          %p362 = pneg %p85
        $region34: #{tpu_custom_call.1} parent=31 // pred_check_branch
          %364 = sbr.rel (%p362) target = $region36
        $region35: #{tpu_custom_call.1} parent=31 // pred_region
          %s365 = sand.u32 %s23, 1
          %s366 = scalar_lea.sflag [#allocation6], %s365
          %s367 = sand.u32 %s75, 1
          %s368 = smul.addr %s367, 1024
          %s369 = scalar_lea.vmem [#allocation10], %s368
          %s370 = smul.u32 2, %s23
          %s372 = ssub.s32 16384, 16384
          %373 = vsyncadd %s366, %s372
          %s374 = smul.addr %s370, 64
          %s375 = scalar_lea.hbm %s2, %s374
          %s376 = sshll.u32 %s369, 4
          %s377 = int_to_ptr.vmem [resolvable:$true] %s376
          %382 = dma.hbm_to_vmem [thread:$0]  %s375, 16384, %s377, %s366, 512, 128, 8
        $region36: #{tpu_custom_call.1} parent=31 // pred_fallthru
          _
        // Predicated region
        $region37: #{tpu_custom_call.1} parent=31 // pred_check
          %p383 = pneg %p111
        $region38: #{tpu_custom_call.1} parent=31 // pred_check_branch
          %385 = sbr.rel (%p383) target = $region40
        $region39: #{tpu_custom_call.1} parent=31 // pred_region
          %s386 = sand.u32 %s23, 1
          %s387 = scalar_lea.sflag [#allocation6], %s386
          %s388 = sand.u32 %s101, 1
          %s389 = smul.addr %s388, 2
          %s390 = scalar_lea.vmem [#allocation11], %s389
          %s391 = smul.u32 2, %s23
          %s393 = ssub.s32 32, 32
          %394 = vsyncadd %s387, %s393
          %s395 = smul.addr %s391, 16
          %s396 = scalar_lea.hbm %s3, %s395
          %s398 = sshll.u32 %s390, 4
          %s399 = int_to_ptr.vmem [resolvable:$true] %s398
          %401 = dma.hbm_to_vmem [thread:$0]  %s396, 32, %s399, %s387
        $region40: #{tpu_custom_call.1} parent=31 // pred_fallthru
          _
        // Predicated region
        $region41: #{tpu_custom_call.1} parent=31 // pred_check
          %p402 = pneg %p137
        $region42: #{tpu_custom_call.1} parent=31 // pred_check_branch
          %404 = sbr.rel (%p402) target = $region44
        $region43: #{tpu_custom_call.1} parent=31 // pred_region
          %s405 = sand.u32 %s23, 1
          %s406 = scalar_lea.sflag [#allocation6], %s405
          %s407 = sand.u32 %s127, 1
          %s408 = smul.addr %s407, 1024
          %s409 = scalar_lea.vmem [#allocation12], %s408
          %s410 = smul.u32 2, %s23
          %s412 = ssub.s32 16384, 16384
          %413 = vsyncadd %s406, %s412
          %s414 = smul.addr %s410, 64
          %s415 = scalar_lea.hbm %s4, %s414
          %s416 = sshll.u32 %s409, 4
          %s417 = int_to_ptr.vmem [resolvable:$true] %s416
          %422 = dma.hbm_to_vmem [thread:$0]  %s415, 16384, %s417, %s406, 512, 128, 8
        $region44: #{tpu_custom_call.1} parent=31 // pred_fallthru
          _
        // Predicated region
        $region45: #{tpu_custom_call.1} parent=31 // pred_check
          %p423 = pneg %p163
        $region46: #{tpu_custom_call.1} parent=31 // pred_check_branch
          %425 = sbr.rel (%p423) target = $region48
        $region47: #{tpu_custom_call.1} parent=31 // pred_region
          %s426 = sand.u32 %s23, 1
          %s427 = scalar_lea.sflag [#allocation6], %s426
          %s428 = sand.u32 %s153, 1
          %s429 = smul.addr %s428, 2
          %s430 = scalar_lea.vmem [#allocation13], %s429
          %s431 = smul.u32 2, %s23
          %s433 = ssub.s32 32, 32
          %434 = vsyncadd %s427, %s433
          %s435 = smul.addr %s431, 16
          %s436 = scalar_lea.hbm %s5, %s435
          %s438 = sshll.u32 %s430, 4
          %s439 = int_to_ptr.vmem [resolvable:$true] %s438
          %441 = dma.hbm_to_vmem [thread:$0]  %s436, 32, %s439, %s427
        $region48: #{tpu_custom_call.1} parent=31 // pred_fallthru
          _
        // Predicated region
        $region49: #{tpu_custom_call.1} parent=31 // pred_check
          %p442 = pneg %p189
        $region50: #{tpu_custom_call.1} parent=31 // pred_check_branch
          %444 = sbr.rel (%p442) target = $region52
        $region51: #{tpu_custom_call.1} parent=31 // pred_region
          %s445 = sand.u32 %s23, 1
          %s446 = scalar_lea.sflag [#allocation6], %s445
          %s447 = sand.u32 %s179, 1
          %s448 = smul.addr %s447, 256
          %s449 = scalar_lea.vmem [#allocation14], %s448
          %s450 = smul.u32 32, %s23
          %s452 = ssub.s32 4096, 4096
          %453 = vsyncadd %s446, %s452
          %s454 = smul.addr %s450, 2
          %s455 = smul.addr %s454, 64
          %s456 = scalar_lea.hbm %s6, %s455
          %s457 = sshll.u32 %s449, 4
          %s458 = int_to_ptr.vmem [resolvable:$true] %s457
          %463 = dma.hbm_to_vmem [thread:$0]  %s456, 4096, %s458, %s446, 128, 128, 8
        $region52: #{tpu_custom_call.1} parent=31 // pred_fallthru
          _
        // Predicated region
        $region53: #{tpu_custom_call.1} parent=31 // pred_check
          %p464 = pneg %p215
        $region54: #{tpu_custom_call.1} parent=31 // pred_check_branch
          %466 = sbr.rel (%p464) target = $region56
        $region55: #{tpu_custom_call.1} parent=31 // pred_region
          %s467 = sand.u32 %s23, 1
          %s468 = scalar_lea.sflag [#allocation6], %s467
          %s469 = sand.u32 %s205, 1
          %s470 = smul.addr %s469, 2
          %s471 = scalar_lea.vmem [#allocation15], %s470
          %s472 = smul.u32 2, %s23
          %s474 = ssub.s32 32, 32
          %475 = vsyncadd %s468, %s474
          %s476 = smul.addr %s472, 16
          %s477 = scalar_lea.hbm %s7, %s476
          %s479 = sshll.u32 %s471, 4
          %s480 = int_to_ptr.vmem [resolvable:$true] %s479
          %482 = dma.hbm_to_vmem [thread:$0]  %s477, 32, %s480, %s468
        $region56: #{tpu_custom_call.1} parent=31 // pred_fallthru
          _
      $region32: #{tpu_custom_call.1} parent=5 // pred_fallthru
        _
      %p483 = scmp.le.s32.totalorder 1, %s23
      %p484 = scmp.lt.s32.totalorder %s23, 5
      %p485 = pnand %p483, %p484
      %p486 = pneg %p485
      // Predicated region
      $region57: #{tpu_custom_call.1} parent=5 // pred_check
        _
      $region58: #{tpu_custom_call.1} parent=5 // pred_check_branch
        %488 = sbr.rel (%p485) target = $region60
      $region59: #{tpu_custom_call.1} parent=5 // pred_region
        %s489 = ssub.s32 %s23, 1
        // Predicated region
        $region61: #{tpu_custom_call.1} parent=59 // pred_check
          %p490 = pneg %p44
        $region62: #{tpu_custom_call.1} parent=59 // pred_check_branch
          %492 = sbr.rel (%p490) target = $region64
        $region63: #{tpu_custom_call.1} parent=59 // pred_region
          %493 = dma.done [#allocation6], 2048
        $region64: #{tpu_custom_call.1} parent=59 // pred_fallthru
          _
        // Predicated region
        $region65: #{tpu_custom_call.1} parent=59 // pred_check
          %p494 = pneg %p65
        $region66: #{tpu_custom_call.1} parent=59 // pred_check_branch
          %496 = sbr.rel (%p494) target = $region68
        $region67: #{tpu_custom_call.1} parent=59 // pred_region
          %497 = dma.done [#allocation9], 32
        $region68: #{tpu_custom_call.1} parent=59 // pred_fallthru
          _
        %s498 = sand.u32 %s28, 1
        %s499 = scalar_lea.sflag [#allocation6], %s498
        %s500 = sand.u32 %s78, 1
        %s501 = smul.addr %s500, 1024
        %s502 = scalar_lea.vmem [#allocation10], %s501
        // Predicated region
        $region69: #{tpu_custom_call.1} parent=59 // pred_check
          %p503 = pneg %p91
        $region70: #{tpu_custom_call.1} parent=59 // pred_check_branch
          %505 = sbr.rel (%p503) target = $region72
        $region71: #{tpu_custom_call.1} parent=59 // pred_region
          %506 = dma.done %s499, 16384
        $region72: #{tpu_custom_call.1} parent=59 // pred_fallthru
          _
        %s507 = sand.u32 %s28, 1
        %s508 = scalar_lea.sflag [#allocation6], %s507
        %s509 = sand.u32 %s104, 1
        %s510 = smul.addr %s509, 2
        %s511 = scalar_lea.vmem [#allocation11], %s510
        // Predicated region
        $region73: #{tpu_custom_call.1} parent=59 // pred_check
          %p512 = pneg %p117
        $region74: #{tpu_custom_call.1} parent=59 // pred_check_branch
          %514 = sbr.rel (%p512) target = $region76
        $region75: #{tpu_custom_call.1} parent=59 // pred_region
          %515 = dma.done %s508, 32
        $region76: #{tpu_custom_call.1} parent=59 // pred_fallthru
          _
        %s516 = sand.u32 %s28, 1
        %s517 = scalar_lea.sflag [#allocation6], %s516
        %s518 = sand.u32 %s130, 1
        %s519 = smul.addr %s518, 1024
        %s520 = scalar_lea.vmem [#allocation12], %s519
        // Predicated region
        $region77: #{tpu_custom_call.1} parent=59 // pred_check
          %p521 = pneg %p143
        $region78: #{tpu_custom_call.1} parent=59 // pred_check_branch
          %523 = sbr.rel (%p521) target = $region80
        $region79: #{tpu_custom_call.1} parent=59 // pred_region
          %524 = dma.done %s517, 16384
        $region80: #{tpu_custom_call.1} parent=59 // pred_fallthru
          _
        %s525 = sand.u32 %s28, 1
        %s526 = scalar_lea.sflag [#allocation6], %s525
        %s527 = sand.u32 %s156, 1
        %s528 = smul.addr %s527, 2
        %s529 = scalar_lea.vmem [#allocation13], %s528
        // Predicated region
        $region81: #{tpu_custom_call.1} parent=59 // pred_check
          %p530 = pneg %p169
        $region82: #{tpu_custom_call.1} parent=59 // pred_check_branch
          %532 = sbr.rel (%p530) target = $region84
        $region83: #{tpu_custom_call.1} parent=59 // pred_region
          %533 = dma.done %s526, 32
        $region84: #{tpu_custom_call.1} parent=59 // pred_fallthru
          _
        %s534 = sand.u32 %s28, 1
        %s535 = scalar_lea.sflag [#allocation6], %s534
        %s536 = sand.u32 %s182, 1
        %s537 = smul.addr %s536, 256
        %s538 = scalar_lea.vmem [#allocation14], %s537
        // Predicated region
        $region85: #{tpu_custom_call.1} parent=59 // pred_check
          %p539 = pneg %p195
        $region86: #{tpu_custom_call.1} parent=59 // pred_check_branch
          %541 = sbr.rel (%p539) target = $region88
        $region87: #{tpu_custom_call.1} parent=59 // pred_region
          %542 = dma.done %s535, 4096
        $region88: #{tpu_custom_call.1} parent=59 // pred_fallthru
          _
        %s543 = sand.u32 %s28, 1
        %s544 = scalar_lea.sflag [#allocation6], %s543
        %s545 = sand.u32 %s208, 1
        %s546 = smul.addr %s545, 2
        %s547 = scalar_lea.vmem [#allocation15], %s546
        // Predicated region
        $region89: #{tpu_custom_call.1} parent=59 // pred_check
          %p548 = pneg %p221
        $region90: #{tpu_custom_call.1} parent=59 // pred_check_branch
          %550 = sbr.rel (%p548) target = $region92
        $region91: #{tpu_custom_call.1} parent=59 // pred_region
          %551 = dma.done %s544, 32
        $region92: #{tpu_custom_call.1} parent=59 // pred_fallthru
          _
        // Predicated region
        $region93: #{tpu_custom_call.1} parent=59 // pred_check
          %p552 = pneg %p242
        $region94: #{tpu_custom_call.1} parent=59 // pred_check_branch
          %554 = sbr.rel (%p552) target = $region96
        $region95: #{tpu_custom_call.1} parent=59 // pred_region
          %555 = dma.done [#allocation9], 32
        $region96: #{tpu_custom_call.1} parent=59 // pred_fallthru
          _
        %p556 = pneg %p44
        %p557 = pneg %p41
        %p558 = pneg %p65
        %p559 = pneg %p62
        %s560 = sand.u32 %s28, 1
        %s561 = scalar_lea.sflag [#allocation6], %s560
        %s562 = sand.u32 %s78, 1
        %s563 = smul.addr %s562, 1024
        %s564 = scalar_lea.vmem [#allocation10], %s563
        %p565 = pneg %p91
        %p566 = pneg %p88
        %s567 = sand.u32 %s28, 1
        %s568 = scalar_lea.sflag [#allocation6], %s567
        %s569 = sand.u32 %s104, 1
        %s570 = smul.addr %s569, 2
        %s571 = scalar_lea.vmem [#allocation11], %s570
        %p572 = pneg %p117
        %p573 = pneg %p114
        %s574 = sand.u32 %s28, 1
        %s575 = scalar_lea.sflag [#allocation6], %s574
        %s576 = sand.u32 %s130, 1
        %s577 = smul.addr %s576, 1024
        %s578 = scalar_lea.vmem [#allocation12], %s577
        %p579 = pneg %p143
        %p580 = pneg %p140
        %s581 = sand.u32 %s28, 1
        %s582 = scalar_lea.sflag [#allocation6], %s581
        %s583 = sand.u32 %s156, 1
        %s584 = smul.addr %s583, 2
        %s585 = scalar_lea.vmem [#allocation13], %s584
        %p586 = pneg %p169
        %p587 = pneg %p166
        %s588 = sand.u32 %s28, 1
        %s589 = scalar_lea.sflag [#allocation6], %s588
        %s590 = sand.u32 %s182, 1
        %s591 = smul.addr %s590, 256
        %s592 = scalar_lea.vmem [#allocation14], %s591
        %p593 = pneg %p195
        %p594 = pneg %p192
        %s595 = sand.u32 %s28, 1
        %s596 = scalar_lea.sflag [#allocation6], %s595
        %s597 = sand.u32 %s208, 1
        %s598 = smul.addr %s597, 2
        %s599 = scalar_lea.vmem [#allocation15], %s598
        %p600 = pneg %p221
        %p601 = pneg %p218
        %p602 = pneg %p242
        %p603 = pneg %p239
        %p604 = pneg %p263
        %p605 = pneg %p260
        %p606 = pneg %p284
        %p607 = pneg %p281
        %p608 = pneg %p305
        %p609 = pneg %p302
        %s610 = smul.u32 2, %s28
        %s611 = smul.u32 2, %s28
        %s612 = smul.u32 2, %s28
        %s613 = smul.u32 2, %s28
        %s614 = smul.u32 32, %s28
        %s615 = smul.u32 2, %s28
        %p616 = scmp.eq.s32.totalorder %s28, 0
        // Predicated region
        $region97: #{tpu_custom_call.1} parent=59 // pred_check
          %p617 = pneg %p616
        $region98: #{tpu_custom_call.1} parent=59 // pred_check_branch
          %619 = sbr.rel (%p617) target = $region100
        $region99: #{tpu_custom_call.1} parent=59 // pred_region
          %620 = vst [vmem:[#allocation2] sm:$0xff] 0.0
          %621 = vst [vmem:[#allocation2 + $0x8] sm:$0xff] 0.0
          %622 = vst [vmem:[#allocation2 + $0x10] sm:$0xff] 0.0
          %623 = vst [vmem:[#allocation2 + $0x18] sm:$0xff] 0.0
          %624 = vst [vmem:[#allocation2 + $0x20] sm:$0xff] 0.0
          %625 = vst [vmem:[#allocation2 + $0x28] sm:$0xff] 0.0
          %626 = vst [vmem:[#allocation2 + $0x30] sm:$0xff] 0.0
          %627 = vst [vmem:[#allocation2 + $0x38] sm:$0xff] 0.0
          %vm628 = vcmask 7168
          %629 = vst.msk [vmem:[#allocation3] sm:$0xff] %vm628, 0.0
          %630 = vst.msk [vmem:[#allocation3 + $0x8] sm:$0xff] %vm628, 0.0
          %631 = vst.msk [vmem:[#allocation3 + $0x10] sm:$0xff] %vm628, 0.0
          %632 = vst.msk [vmem:[#allocation3 + $0x18] sm:$0xff] %vm628, 0.0
        $region100: #{tpu_custom_call.1} parent=59 // pred_fallthru
          _
        %v633 = vld [vmem:[#allocation5] sm:$0xff]
        %v634 = vld [vmem:[#allocation5 + $0x8] sm:$0xff]
        %v635 = vld [vmem:[#allocation5 + $0x10] sm:$0xff]
        %v636 = vld [vmem:[#allocation5 + $0x18] sm:$0xff]
        %v637 = vld [vmem:[#allocation5 + $0x20] sm:$0xff]
        %v638 = vld [vmem:[#allocation5 + $0x28] sm:$0xff]
        %v639 = vld [vmem:[#allocation5 + $0x30] sm:$0xff]
        %v640 = vld [vmem:[#allocation5 + $0x38] sm:$0xff]
        %v641 = vld [vmem:[#allocation5 + $0x40] sm:$0xff]
        %v642 = vld [vmem:[#allocation5 + $0x48] sm:$0xff]
        %v643 = vld [vmem:[#allocation5 + $0x50] sm:$0xff]
        %v644 = vld [vmem:[#allocation5 + $0x58] sm:$0xff]
        %v645 = vld [vmem:[#allocation5 + $0x60] sm:$0xff]
        %v646 = vld [vmem:[#allocation5 + $0x68] sm:$0xff]
        %v647 = vld [vmem:[#allocation5 + $0x70] sm:$0xff]
        %v648 = vld [vmem:[#allocation5 + $0x78] sm:$0xff]
        %v649 = vld [vmem:[%s502] sm:$0xff]
        %v650 = vld [vmem:[%s502 + $0x8] sm:$0xff]
        %v651 = vld [vmem:[%s502 + $0x10] sm:$0xff]
        %v652 = vld [vmem:[%s502 + $0x18] sm:$0xff]
        %v653 = vld [vmem:[%s502 + $0x20] sm:$0xff]
        %v654 = vld [vmem:[%s502 + $0x28] sm:$0xff]
        %v655 = vld [vmem:[%s502 + $0x30] sm:$0xff]
        %v656 = vld [vmem:[%s502 + $0x38] sm:$0xff]
        %v657 = vld [vmem:[%s502 + $0x40] sm:$0xff]
        %v658 = vld [vmem:[%s502 + $0x48] sm:$0xff]
        %v659 = vld [vmem:[%s502 + $0x50] sm:$0xff]
        %v660 = vld [vmem:[%s502 + $0x58] sm:$0xff]
        %v661 = vld [vmem:[%s502 + $0x60] sm:$0xff]
        %v662 = vld [vmem:[%s502 + $0x68] sm:$0xff]
        %v663 = vld [vmem:[%s502 + $0x70] sm:$0xff]
        %v664 = vld [vmem:[%s502 + $0x78] sm:$0xff]
        %v665 = vld [vmem:[%s502 + $0x80] sm:$0xff]
        %v666 = vld [vmem:[%s502 + $0x88] sm:$0xff]
        %v667 = vld [vmem:[%s502 + $0x90] sm:$0xff]
        %v668 = vld [vmem:[%s502 + $0x98] sm:$0xff]
        %v669 = vld [vmem:[%s502 + $0xa0] sm:$0xff]
        %v670 = vld [vmem:[%s502 + $0xa8] sm:$0xff]
        %v671 = vld [vmem:[%s502 + $0xb0] sm:$0xff]
        %v672 = vld [vmem:[%s502 + $0xb8] sm:$0xff]
        %v673 = vld [vmem:[%s502 + $0xc0] sm:$0xff]
        %v674 = vld [vmem:[%s502 + $0xc8] sm:$0xff]
        %v675 = vld [vmem:[%s502 + $0xd0] sm:$0xff]
        %v676 = vld [vmem:[%s502 + $0xd8] sm:$0xff]
        %v677 = vld [vmem:[%s502 + $0xe0] sm:$0xff]
        %v678 = vld [vmem:[%s502 + $0xe8] sm:$0xff]
        %v679 = vld [vmem:[%s502 + $0xf0] sm:$0xff]
        %v680 = vld [vmem:[%s502 + $0xf8] sm:$0xff]
        %v681 = vld [vmem:[%s502 + $0x100] sm:$0xff]
        %v682 = vld [vmem:[%s502 + $0x108] sm:$0xff]
        %v683 = vld [vmem:[%s502 + $0x110] sm:$0xff]
        %v684 = vld [vmem:[%s502 + $0x118] sm:$0xff]
        %v685 = vld [vmem:[%s502 + $0x120] sm:$0xff]
        %v686 = vld [vmem:[%s502 + $0x128] sm:$0xff]
        %v687 = vld [vmem:[%s502 + $0x130] sm:$0xff]
        %v688 = vld [vmem:[%s502 + $0x138] sm:$0xff]
        %v689 = vld [vmem:[%s502 + $0x140] sm:$0xff]
        %v690 = vld [vmem:[%s502 + $0x148] sm:$0xff]
        %v691 = vld [vmem:[%s502 + $0x150] sm:$0xff]
        %v692 = vld [vmem:[%s502 + $0x158] sm:$0xff]
        %v693 = vld [vmem:[%s502 + $0x160] sm:$0xff]
        %v694 = vld [vmem:[%s502 + $0x168] sm:$0xff]
        %v695 = vld [vmem:[%s502 + $0x170] sm:$0xff]
        %v696 = vld [vmem:[%s502 + $0x178] sm:$0xff]
        %v697 = vld [vmem:[%s502 + $0x180] sm:$0xff]
        %v698 = vld [vmem:[%s502 + $0x188] sm:$0xff]
        %v699 = vld [vmem:[%s502 + $0x190] sm:$0xff]
        %v700 = vld [vmem:[%s502 + $0x198] sm:$0xff]
        %v701 = vld [vmem:[%s502 + $0x1a0] sm:$0xff]
        %v702 = vld [vmem:[%s502 + $0x1a8] sm:$0xff]
        %v703 = vld [vmem:[%s502 + $0x1b0] sm:$0xff]
        %v704 = vld [vmem:[%s502 + $0x1b8] sm:$0xff]
        %v705 = vld [vmem:[%s502 + $0x1c0] sm:$0xff]
        %v706 = vld [vmem:[%s502 + $0x1c8] sm:$0xff]
        %v707 = vld [vmem:[%s502 + $0x1d0] sm:$0xff]
        %v708 = vld [vmem:[%s502 + $0x1d8] sm:$0xff]
        %v709 = vld [vmem:[%s502 + $0x1e0] sm:$0xff]
        %v710 = vld [vmem:[%s502 + $0x1e8] sm:$0xff]
        %v711 = vld [vmem:[%s502 + $0x1f0] sm:$0xff]
        %v712 = vld [vmem:[%s502 + $0x1f8] sm:$0xff]
        %v713 = vld [vmem:[%s502 + $0x200] sm:$0xff]
        %v714 = vld [vmem:[%s502 + $0x208] sm:$0xff]
        %v715 = vld [vmem:[%s502 + $0x210] sm:$0xff]
        %v716 = vld [vmem:[%s502 + $0x218] sm:$0xff]
        %v717 = vld [vmem:[%s502 + $0x220] sm:$0xff]
        %v718 = vld [vmem:[%s502 + $0x228] sm:$0xff]
        %v719 = vld [vmem:[%s502 + $0x230] sm:$0xff]
        %v720 = vld [vmem:[%s502 + $0x238] sm:$0xff]
        %v721 = vld [vmem:[%s502 + $0x240] sm:$0xff]
        %v722 = vld [vmem:[%s502 + $0x248] sm:$0xff]
        %v723 = vld [vmem:[%s502 + $0x250] sm:$0xff]
        %v724 = vld [vmem:[%s502 + $0x258] sm:$0xff]
        %v725 = vld [vmem:[%s502 + $0x260] sm:$0xff]
        %v726 = vld [vmem:[%s502 + $0x268] sm:$0xff]
        %v727 = vld [vmem:[%s502 + $0x270] sm:$0xff]
        %v728 = vld [vmem:[%s502 + $0x278] sm:$0xff]
        %v729 = vld [vmem:[%s502 + $0x280] sm:$0xff]
        %v730 = vld [vmem:[%s502 + $0x288] sm:$0xff]
        %v731 = vld [vmem:[%s502 + $0x290] sm:$0xff]
        %v732 = vld [vmem:[%s502 + $0x298] sm:$0xff]
        %v733 = vld [vmem:[%s502 + $0x2a0] sm:$0xff]
        %v734 = vld [vmem:[%s502 + $0x2a8] sm:$0xff]
        %v735 = vld [vmem:[%s502 + $0x2b0] sm:$0xff]
        %v736 = vld [vmem:[%s502 + $0x2b8] sm:$0xff]
        %v737 = vld [vmem:[%s502 + $0x2c0] sm:$0xff]
        %v738 = vld [vmem:[%s502 + $0x2c8] sm:$0xff]
        %v739 = vld [vmem:[%s502 + $0x2d0] sm:$0xff]
        %v740 = vld [vmem:[%s502 + $0x2d8] sm:$0xff]
        %v741 = vld [vmem:[%s502 + $0x2e0] sm:$0xff]
        %v742 = vld [vmem:[%s502 + $0x2e8] sm:$0xff]
        %v743 = vld [vmem:[%s502 + $0x2f0] sm:$0xff]
        %v744 = vld [vmem:[%s502 + $0x2f8] sm:$0xff]
        %v745 = vld [vmem:[%s502 + $0x300] sm:$0xff]
        %v746 = vld [vmem:[%s502 + $0x308] sm:$0xff]
        %v747 = vld [vmem:[%s502 + $0x310] sm:$0xff]
        %v748 = vld [vmem:[%s502 + $0x318] sm:$0xff]
        %v749 = vld [vmem:[%s502 + $0x320] sm:$0xff]
        %v750 = vld [vmem:[%s502 + $0x328] sm:$0xff]
        %v751 = vld [vmem:[%s502 + $0x330] sm:$0xff]
        %v752 = vld [vmem:[%s502 + $0x338] sm:$0xff]
        %v753 = vld [vmem:[%s502 + $0x340] sm:$0xff]
        %v754 = vld [vmem:[%s502 + $0x348] sm:$0xff]
        %v755 = vld [vmem:[%s502 + $0x350] sm:$0xff]
        %v756 = vld [vmem:[%s502 + $0x358] sm:$0xff]
        %v757 = vld [vmem:[%s502 + $0x360] sm:$0xff]
        %v758 = vld [vmem:[%s502 + $0x368] sm:$0xff]
        %v759 = vld [vmem:[%s502 + $0x370] sm:$0xff]
        %v760 = vld [vmem:[%s502 + $0x378] sm:$0xff]
        %v761 = vld [vmem:[%s502 + $0x380] sm:$0xff]
        %v762 = vld [vmem:[%s502 + $0x388] sm:$0xff]
        %v763 = vld [vmem:[%s502 + $0x390] sm:$0xff]
        %v764 = vld [vmem:[%s502 + $0x398] sm:$0xff]
        %v765 = vld [vmem:[%s502 + $0x3a0] sm:$0xff]
        %v766 = vld [vmem:[%s502 + $0x3a8] sm:$0xff]
        %v767 = vld [vmem:[%s502 + $0x3b0] sm:$0xff]
        %v768 = vld [vmem:[%s502 + $0x3b8] sm:$0xff]
        %v769 = vld [vmem:[%s502 + $0x3c0] sm:$0xff]
        %v770 = vld [vmem:[%s502 + $0x3c8] sm:$0xff]
        %v771 = vld [vmem:[%s502 + $0x3d0] sm:$0xff]
        %v772 = vld [vmem:[%s502 + $0x3d8] sm:$0xff]
        %v773 = vld [vmem:[%s502 + $0x3e0] sm:$0xff]
        %v774 = vld [vmem:[%s502 + $0x3e8] sm:$0xff]
        %v775 = vld [vmem:[%s502 + $0x3f0] sm:$0xff]
        %v776 = vld [vmem:[%s502 + $0x3f8] sm:$0xff]
        %v777 = vld [vmem:[%s511] sm:$0x3]
        %v779 = vlaneseq
        %v780 = vshrl.u32 %v779, 7
        %v781 = vsub.s32 0, %v780
        %v782 = vrot.slane %v777, %v781
        %v783 = vlaneseq
        %v784 = vshrl.u32 %v783, 7
        %v785 = vsub.s32 1, %v784
        %v786 = vrot.slane %v777, %v785
        %v805 = vunpack.c.l.b16 %v633
        %v806 = vunpack.c.h.b16 %v633
        %v807 = vunpack.c.l.b16 %v634
        %v808 = vunpack.c.h.b16 %v634
        %v809 = vunpack.c.l.b16 %v635
        %v810 = vunpack.c.h.b16 %v635
        %v811 = vunpack.c.l.b16 %v636
        %v812 = vunpack.c.h.b16 %v636
        %v813 = vunpack.c.l.b16 %v637
        %v814 = vunpack.c.h.b16 %v637
        %v815 = vunpack.c.l.b16 %v638
        %v816 = vunpack.c.h.b16 %v638
        %v817 = vunpack.c.l.b16 %v639
        %v818 = vunpack.c.h.b16 %v639
        %v819 = vunpack.c.l.b16 %v640
        %v820 = vunpack.c.h.b16 %v640
        %v821 = vunpack.c.l.b16 %v641
        %v822 = vunpack.c.h.b16 %v641
        %v823 = vunpack.c.l.b16 %v642
        %v824 = vunpack.c.h.b16 %v642
        %v825 = vunpack.c.l.b16 %v643
        %v826 = vunpack.c.h.b16 %v643
        %v827 = vunpack.c.l.b16 %v644
        %v828 = vunpack.c.h.b16 %v644
        %v829 = vunpack.c.l.b16 %v645
        %v830 = vunpack.c.h.b16 %v645
        %v831 = vunpack.c.l.b16 %v646
        %v832 = vunpack.c.h.b16 %v646
        %v833 = vunpack.c.l.b16 %v647
        %v834 = vunpack.c.h.b16 %v647
        %v835 = vunpack.c.l.b16 %v648
        %v836 = vunpack.c.h.b16 %v648
        %v837 = vpack.c.b16 %v813, %v805
        %v838 = vpack.c.b16 %v814, %v806
        %v839 = vpack.c.b16 %v815, %v807
        %v840 = vpack.c.b16 %v816, %v808
        %v841 = vpack.c.b16 %v817, %v809
        %v842 = vpack.c.b16 %v818, %v810
        %v843 = vpack.c.b16 %v819, %v811
        %v844 = vpack.c.b16 %v820, %v812
        %v845 = vpack.c.b16 %v829, %v821
        %v846 = vpack.c.b16 %v830, %v822
        %v847 = vpack.c.b16 %v831, %v823
        %v848 = vpack.c.b16 %v832, %v824
        %v849 = vpack.c.b16 %v833, %v825
        %v850 = vpack.c.b16 %v834, %v826
        %v851 = vpack.c.b16 %v835, %v827
        %v852 = vpack.c.b16 %v836, %v828
        %v997 = vunpack.c.l.b16 %v649
        %v998 = vunpack.c.h.b16 %v649
        %v999 = vunpack.c.l.b16 %v650
        %v1000 = vunpack.c.h.b16 %v650
        %v1001 = vunpack.c.l.b16 %v651
        %v1002 = vunpack.c.h.b16 %v651
        %v1003 = vunpack.c.l.b16 %v652
        %v1004 = vunpack.c.h.b16 %v652
        %v1005 = vunpack.c.l.b16 %v653
        %v1006 = vunpack.c.h.b16 %v653
        %v1007 = vunpack.c.l.b16 %v654
        %v1008 = vunpack.c.h.b16 %v654
        %v1009 = vunpack.c.l.b16 %v655
        %v1010 = vunpack.c.h.b16 %v655
        %v1011 = vunpack.c.l.b16 %v656
        %v1012 = vunpack.c.h.b16 %v656
        %v1013 = vunpack.c.l.b16 %v657
        %v1014 = vunpack.c.h.b16 %v657
        %v1015 = vunpack.c.l.b16 %v658
        %v1016 = vunpack.c.h.b16 %v658
        %v1017 = vunpack.c.l.b16 %v659
        %v1018 = vunpack.c.h.b16 %v659
        %v1019 = vunpack.c.l.b16 %v660
        %v1020 = vunpack.c.h.b16 %v660
        %v1021 = vunpack.c.l.b16 %v661
        %v1022 = vunpack.c.h.b16 %v661
        %v1023 = vunpack.c.l.b16 %v662
        %v1024 = vunpack.c.h.b16 %v662
        %v1025 = vunpack.c.l.b16 %v663
        %v1026 = vunpack.c.h.b16 %v663
        %v1027 = vunpack.c.l.b16 %v664
        %v1028 = vunpack.c.h.b16 %v664
        %v1029 = vunpack.c.l.b16 %v665
        %v1030 = vunpack.c.h.b16 %v665
        %v1031 = vunpack.c.l.b16 %v666
        %v1032 = vunpack.c.h.b16 %v666
        %v1033 = vunpack.c.l.b16 %v667
        %v1034 = vunpack.c.h.b16 %v667
        %v1035 = vunpack.c.l.b16 %v668
        %v1036 = vunpack.c.h.b16 %v668
        %v1037 = vunpack.c.l.b16 %v669
        %v1038 = vunpack.c.h.b16 %v669
        %v1039 = vunpack.c.l.b16 %v670
        %v1040 = vunpack.c.h.b16 %v670
        %v1041 = vunpack.c.l.b16 %v671
        %v1042 = vunpack.c.h.b16 %v671
        %v1043 = vunpack.c.l.b16 %v672
        %v1044 = vunpack.c.h.b16 %v672
        %v1045 = vunpack.c.l.b16 %v673
        %v1046 = vunpack.c.h.b16 %v673
        %v1047 = vunpack.c.l.b16 %v674
        %v1048 = vunpack.c.h.b16 %v674
        %v1049 = vunpack.c.l.b16 %v675
        %v1050 = vunpack.c.h.b16 %v675
        %v1051 = vunpack.c.l.b16 %v676
        %v1052 = vunpack.c.h.b16 %v676
        %v1053 = vunpack.c.l.b16 %v677
        %v1054 = vunpack.c.h.b16 %v677
        %v1055 = vunpack.c.l.b16 %v678
        %v1056 = vunpack.c.h.b16 %v678
        %v1057 = vunpack.c.l.b16 %v679
        %v1058 = vunpack.c.h.b16 %v679
        %v1059 = vunpack.c.l.b16 %v680
        %v1060 = vunpack.c.h.b16 %v680
        %v1061 = vunpack.c.l.b16 %v681
        %v1062 = vunpack.c.h.b16 %v681
        %v1063 = vunpack.c.l.b16 %v682
        %v1064 = vunpack.c.h.b16 %v682
        %v1065 = vunpack.c.l.b16 %v683
        %v1066 = vunpack.c.h.b16 %v683
        %v1067 = vunpack.c.l.b16 %v684
        %v1068 = vunpack.c.h.b16 %v684
        %v1069 = vunpack.c.l.b16 %v685
        %v1070 = vunpack.c.h.b16 %v685
        %v1071 = vunpack.c.l.b16 %v686
        %v1072 = vunpack.c.h.b16 %v686
        %v1073 = vunpack.c.l.b16 %v687
        %v1074 = vunpack.c.h.b16 %v687
        %v1075 = vunpack.c.l.b16 %v688
        %v1076 = vunpack.c.h.b16 %v688
        %v1077 = vunpack.c.l.b16 %v689
        %v1078 = vunpack.c.h.b16 %v689
        %v1079 = vunpack.c.l.b16 %v690
        %v1080 = vunpack.c.h.b16 %v690
        %v1081 = vunpack.c.l.b16 %v691
        %v1082 = vunpack.c.h.b16 %v691
        %v1083 = vunpack.c.l.b16 %v692
        %v1084 = vunpack.c.h.b16 %v692
        %v1085 = vunpack.c.l.b16 %v693
        %v1086 = vunpack.c.h.b16 %v693
        %v1087 = vunpack.c.l.b16 %v694
        %v1088 = vunpack.c.h.b16 %v694
        %v1089 = vunpack.c.l.b16 %v695
        %v1090 = vunpack.c.h.b16 %v695
        %v1091 = vunpack.c.l.b16 %v696
        %v1092 = vunpack.c.h.b16 %v696
        %v1093 = vunpack.c.l.b16 %v697
        %v1094 = vunpack.c.h.b16 %v697
        %v1095 = vunpack.c.l.b16 %v698
        %v1096 = vunpack.c.h.b16 %v698
        %v1097 = vunpack.c.l.b16 %v699
        %v1098 = vunpack.c.h.b16 %v699
        %v1099 = vunpack.c.l.b16 %v700
        %v1100 = vunpack.c.h.b16 %v700
        %v1101 = vunpack.c.l.b16 %v701
        %v1102 = vunpack.c.h.b16 %v701
        %v1103 = vunpack.c.l.b16 %v702
        %v1104 = vunpack.c.h.b16 %v702
        %v1105 = vunpack.c.l.b16 %v703
        %v1106 = vunpack.c.h.b16 %v703
        %v1107 = vunpack.c.l.b16 %v704
        %v1108 = vunpack.c.h.b16 %v704
        %v1109 = vunpack.c.l.b16 %v705
        %v1110 = vunpack.c.h.b16 %v705
        %v1111 = vunpack.c.l.b16 %v706
        %v1112 = vunpack.c.h.b16 %v706
        %v1113 = vunpack.c.l.b16 %v707
        %v1114 = vunpack.c.h.b16 %v707
        %v1115 = vunpack.c.l.b16 %v708
        %v1116 = vunpack.c.h.b16 %v708
        %v1117 = vunpack.c.l.b16 %v709
        %v1118 = vunpack.c.h.b16 %v709
        %v1119 = vunpack.c.l.b16 %v710
        %v1120 = vunpack.c.h.b16 %v710
        %v1121 = vunpack.c.l.b16 %v711
        %v1122 = vunpack.c.h.b16 %v711
        %v1123 = vunpack.c.l.b16 %v712
        %v1124 = vunpack.c.h.b16 %v712
        %v1125 = vunpack.c.l.b16 %v713
        %v1126 = vunpack.c.h.b16 %v713
        %v1127 = vunpack.c.l.b16 %v714
        %v1128 = vunpack.c.h.b16 %v714
        %v1129 = vunpack.c.l.b16 %v715
        %v1130 = vunpack.c.h.b16 %v715
        %v1131 = vunpack.c.l.b16 %v716
        %v1132 = vunpack.c.h.b16 %v716
        %v1133 = vunpack.c.l.b16 %v717
        %v1134 = vunpack.c.h.b16 %v717
        %v1135 = vunpack.c.l.b16 %v718
        %v1136 = vunpack.c.h.b16 %v718
        %v1137 = vunpack.c.l.b16 %v719
        %v1138 = vunpack.c.h.b16 %v719
        %v1139 = vunpack.c.l.b16 %v720
        %v1140 = vunpack.c.h.b16 %v720
        %v1141 = vunpack.c.l.b16 %v721
        %v1142 = vunpack.c.h.b16 %v721
        %v1143 = vunpack.c.l.b16 %v722
        %v1144 = vunpack.c.h.b16 %v722
        %v1145 = vunpack.c.l.b16 %v723
        %v1146 = vunpack.c.h.b16 %v723
        %v1147 = vunpack.c.l.b16 %v724
        %v1148 = vunpack.c.h.b16 %v724
        %v1149 = vunpack.c.l.b16 %v725
        %v1150 = vunpack.c.h.b16 %v725
        %v1151 = vunpack.c.l.b16 %v726
        %v1152 = vunpack.c.h.b16 %v726
        %v1153 = vunpack.c.l.b16 %v727
        %v1154 = vunpack.c.h.b16 %v727
        %v1155 = vunpack.c.l.b16 %v728
        %v1156 = vunpack.c.h.b16 %v728
        %v1157 = vunpack.c.l.b16 %v729
        %v1158 = vunpack.c.h.b16 %v729
        %v1159 = vunpack.c.l.b16 %v730
        %v1160 = vunpack.c.h.b16 %v730
        %v1161 = vunpack.c.l.b16 %v731
        %v1162 = vunpack.c.h.b16 %v731
        %v1163 = vunpack.c.l.b16 %v732
        %v1164 = vunpack.c.h.b16 %v732
        %v1165 = vunpack.c.l.b16 %v733
        %v1166 = vunpack.c.h.b16 %v733
        %v1167 = vunpack.c.l.b16 %v734
        %v1168 = vunpack.c.h.b16 %v734
        %v1169 = vunpack.c.l.b16 %v735
        %v1170 = vunpack.c.h.b16 %v735
        %v1171 = vunpack.c.l.b16 %v736
        %v1172 = vunpack.c.h.b16 %v736
        %v1173 = vunpack.c.l.b16 %v737
        %v1174 = vunpack.c.h.b16 %v737
        %v1175 = vunpack.c.l.b16 %v738
        %v1176 = vunpack.c.h.b16 %v738
        %v1177 = vunpack.c.l.b16 %v739
        %v1178 = vunpack.c.h.b16 %v739
        %v1179 = vunpack.c.l.b16 %v740
        %v1180 = vunpack.c.h.b16 %v740
        %v1181 = vunpack.c.l.b16 %v741
        %v1182 = vunpack.c.h.b16 %v741
        %v1183 = vunpack.c.l.b16 %v742
        %v1184 = vunpack.c.h.b16 %v742
        %v1185 = vunpack.c.l.b16 %v743
        %v1186 = vunpack.c.h.b16 %v743
        %v1187 = vunpack.c.l.b16 %v744
        %v1188 = vunpack.c.h.b16 %v744
        %v1189 = vunpack.c.l.b16 %v745
        %v1190 = vunpack.c.h.b16 %v745
        %v1191 = vunpack.c.l.b16 %v746
        %v1192 = vunpack.c.h.b16 %v746
        %v1193 = vunpack.c.l.b16 %v747
        %v1194 = vunpack.c.h.b16 %v747
        %v1195 = vunpack.c.l.b16 %v748
        %v1196 = vunpack.c.h.b16 %v748
        %v1197 = vunpack.c.l.b16 %v749
        %v1198 = vunpack.c.h.b16 %v749
        %v1199 = vunpack.c.l.b16 %v750
        %v1200 = vunpack.c.h.b16 %v750
        %v1201 = vunpack.c.l.b16 %v751
        %v1202 = vunpack.c.h.b16 %v751
        %v1203 = vunpack.c.l.b16 %v752
        %v1204 = vunpack.c.h.b16 %v752
        %v1205 = vunpack.c.l.b16 %v753
        %v1206 = vunpack.c.h.b16 %v753
        %v1207 = vunpack.c.l.b16 %v754
        %v1208 = vunpack.c.h.b16 %v754
        %v1209 = vunpack.c.l.b16 %v755
        %v1210 = vunpack.c.h.b16 %v755
        %v1211 = vunpack.c.l.b16 %v756
        %v1212 = vunpack.c.h.b16 %v756
        %v1213 = vunpack.c.l.b16 %v757
        %v1214 = vunpack.c.h.b16 %v757
        %v1215 = vunpack.c.l.b16 %v758
        %v1216 = vunpack.c.h.b16 %v758
        %v1217 = vunpack.c.l.b16 %v759
        %v1218 = vunpack.c.h.b16 %v759
        %v1219 = vunpack.c.l.b16 %v760
        %v1220 = vunpack.c.h.b16 %v760
        %v1221 = vunpack.c.l.b16 %v761
        %v1222 = vunpack.c.h.b16 %v761
        %v1223 = vunpack.c.l.b16 %v762
        %v1224 = vunpack.c.h.b16 %v762
        %v1225 = vunpack.c.l.b16 %v763
        %v1226 = vunpack.c.h.b16 %v763
        %v1227 = vunpack.c.l.b16 %v764
        %v1228 = vunpack.c.h.b16 %v764
        %v1229 = vunpack.c.l.b16 %v765
        %v1230 = vunpack.c.h.b16 %v765
        %v1231 = vunpack.c.l.b16 %v766
        %v1232 = vunpack.c.h.b16 %v766
        %v1233 = vunpack.c.l.b16 %v767
        %v1234 = vunpack.c.h.b16 %v767
        %v1235 = vunpack.c.l.b16 %v768
        %v1236 = vunpack.c.h.b16 %v768
        %v1237 = vunpack.c.l.b16 %v769
        %v1238 = vunpack.c.h.b16 %v769
        %v1239 = vunpack.c.l.b16 %v770
        %v1240 = vunpack.c.h.b16 %v770
        %v1241 = vunpack.c.l.b16 %v771
        %v1242 = vunpack.c.h.b16 %v771
        %v1243 = vunpack.c.l.b16 %v772
        %v1244 = vunpack.c.h.b16 %v772
        %v1245 = vunpack.c.l.b16 %v773
        %v1246 = vunpack.c.h.b16 %v773
        %v1247 = vunpack.c.l.b16 %v774
        %v1248 = vunpack.c.h.b16 %v774
        %v1249 = vunpack.c.l.b16 %v775
        %v1250 = vunpack.c.h.b16 %v775
        %v1251 = vunpack.c.l.b16 %v776
        %v1252 = vunpack.c.h.b16 %v776
        %v1253 = vpack.c.b16 %v999, %v997
        %v1254 = vpack.c.b16 %v1000, %v998
        %v1255 = vpack.c.b16 %v1003, %v1001
        %v1256 = vpack.c.b16 %v1004, %v1002
        %v1257 = vpack.c.b16 %v1007, %v1005
        %v1258 = vpack.c.b16 %v1008, %v1006
        %v1259 = vpack.c.b16 %v1011, %v1009
        %v1260 = vpack.c.b16 %v1012, %v1010
        %v1261 = vpack.c.b16 %v1015, %v1013
        %v1262 = vpack.c.b16 %v1016, %v1014
        %v1263 = vpack.c.b16 %v1019, %v1017
        %v1264 = vpack.c.b16 %v1020, %v1018
        %v1265 = vpack.c.b16 %v1023, %v1021
        %v1266 = vpack.c.b16 %v1024, %v1022
        %v1267 = vpack.c.b16 %v1027, %v1025
        %v1268 = vpack.c.b16 %v1028, %v1026
        %v1269 = vpack.c.b16 %v1031, %v1029
        %v1270 = vpack.c.b16 %v1032, %v1030
        %v1271 = vpack.c.b16 %v1035, %v1033
        %v1272 = vpack.c.b16 %v1036, %v1034
        %v1273 = vpack.c.b16 %v1039, %v1037
        %v1274 = vpack.c.b16 %v1040, %v1038
        %v1275 = vpack.c.b16 %v1043, %v1041
        %v1276 = vpack.c.b16 %v1044, %v1042
        %v1277 = vpack.c.b16 %v1047, %v1045
        %v1278 = vpack.c.b16 %v1048, %v1046
        %v1279 = vpack.c.b16 %v1051, %v1049
        %v1280 = vpack.c.b16 %v1052, %v1050
        %v1281 = vpack.c.b16 %v1055, %v1053
        %v1282 = vpack.c.b16 %v1056, %v1054
        %v1283 = vpack.c.b16 %v1059, %v1057
        %v1284 = vpack.c.b16 %v1060, %v1058
        %v1285 = vpack.c.b16 %v1063, %v1061
        %v1286 = vpack.c.b16 %v1064, %v1062
        %v1287 = vpack.c.b16 %v1067, %v1065
        %v1288 = vpack.c.b16 %v1068, %v1066
        %v1289 = vpack.c.b16 %v1071, %v1069
        %v1290 = vpack.c.b16 %v1072, %v1070
        %v1291 = vpack.c.b16 %v1075, %v1073
        %v1292 = vpack.c.b16 %v1076, %v1074
        %v1293 = vpack.c.b16 %v1079, %v1077
        %v1294 = vpack.c.b16 %v1080, %v1078
        %v1295 = vpack.c.b16 %v1083, %v1081
        %v1296 = vpack.c.b16 %v1084, %v1082
        %v1297 = vpack.c.b16 %v1087, %v1085
        %v1298 = vpack.c.b16 %v1088, %v1086
        %v1299 = vpack.c.b16 %v1091, %v1089
        %v1300 = vpack.c.b16 %v1092, %v1090
        %v1301 = vpack.c.b16 %v1095, %v1093
        %v1302 = vpack.c.b16 %v1096, %v1094
        %v1303 = vpack.c.b16 %v1099, %v1097
        %v1304 = vpack.c.b16 %v1100, %v1098
        %v1305 = vpack.c.b16 %v1103, %v1101
        %v1306 = vpack.c.b16 %v1104, %v1102
        %v1307 = vpack.c.b16 %v1107, %v1105
        %v1308 = vpack.c.b16 %v1108, %v1106
        %v1309 = vpack.c.b16 %v1111, %v1109
        %v1310 = vpack.c.b16 %v1112, %v1110
        %v1311 = vpack.c.b16 %v1115, %v1113
        %v1312 = vpack.c.b16 %v1116, %v1114
        %v1313 = vpack.c.b16 %v1119, %v1117
        %v1314 = vpack.c.b16 %v1120, %v1118
        %v1315 = vpack.c.b16 %v1123, %v1121
        %v1316 = vpack.c.b16 %v1124, %v1122
        %v1317 = vpack.c.b16 %v1127, %v1125
        %v1318 = vpack.c.b16 %v1128, %v1126
        %v1319 = vpack.c.b16 %v1131, %v1129
        %v1320 = vpack.c.b16 %v1132, %v1130
        %v1321 = vpack.c.b16 %v1135, %v1133
        %v1322 = vpack.c.b16 %v1136, %v1134
        %v1323 = vpack.c.b16 %v1139, %v1137
        %v1324 = vpack.c.b16 %v1140, %v1138
        %v1325 = vpack.c.b16 %v1143, %v1141
        %v1326 = vpack.c.b16 %v1144, %v1142
        %v1327 = vpack.c.b16 %v1147, %v1145
        %v1328 = vpack.c.b16 %v1148, %v1146
        %v1329 = vpack.c.b16 %v1151, %v1149
        %v1330 = vpack.c.b16 %v1152, %v1150
        %v1331 = vpack.c.b16 %v1155, %v1153
        %v1332 = vpack.c.b16 %v1156, %v1154
        %v1333 = vpack.c.b16 %v1159, %v1157
        %v1334 = vpack.c.b16 %v1160, %v1158
        %v1335 = vpack.c.b16 %v1163, %v1161
        %v1336 = vpack.c.b16 %v1164, %v1162
        %v1337 = vpack.c.b16 %v1167, %v1165
        %v1338 = vpack.c.b16 %v1168, %v1166
        %v1339 = vpack.c.b16 %v1171, %v1169
        %v1340 = vpack.c.b16 %v1172, %v1170
        %v1341 = vpack.c.b16 %v1175, %v1173
        %v1342 = vpack.c.b16 %v1176, %v1174
        %v1343 = vpack.c.b16 %v1179, %v1177
        %v1344 = vpack.c.b16 %v1180, %v1178
        %v1345 = vpack.c.b16 %v1183, %v1181
        %v1346 = vpack.c.b16 %v1184, %v1182
        %v1347 = vpack.c.b16 %v1187, %v1185
        %v1348 = vpack.c.b16 %v1188, %v1186
        %v1349 = vpack.c.b16 %v1191, %v1189
        %v1350 = vpack.c.b16 %v1192, %v1190
        %v1351 = vpack.c.b16 %v1195, %v1193
        %v1352 = vpack.c.b16 %v1196, %v1194
        %v1353 = vpack.c.b16 %v1199, %v1197
        %v1354 = vpack.c.b16 %v1200, %v1198
        %v1355 = vpack.c.b16 %v1203, %v1201
        %v1356 = vpack.c.b16 %v1204, %v1202
        %v1357 = vpack.c.b16 %v1207, %v1205
        %v1358 = vpack.c.b16 %v1208, %v1206
        %v1359 = vpack.c.b16 %v1211, %v1209
        %v1360 = vpack.c.b16 %v1212, %v1210
        %v1361 = vpack.c.b16 %v1215, %v1213
        %v1362 = vpack.c.b16 %v1216, %v1214
        %v1363 = vpack.c.b16 %v1219, %v1217
        %v1364 = vpack.c.b16 %v1220, %v1218
        %v1365 = vpack.c.b16 %v1223, %v1221
        %v1366 = vpack.c.b16 %v1224, %v1222
        %v1367 = vpack.c.b16 %v1227, %v1225
        %v1368 = vpack.c.b16 %v1228, %v1226
        %v1369 = vpack.c.b16 %v1231, %v1229
        %v1370 = vpack.c.b16 %v1232, %v1230
        %v1371 = vpack.c.b16 %v1235, %v1233
        %v1372 = vpack.c.b16 %v1236, %v1234
        %v1373 = vpack.c.b16 %v1239, %v1237
        %v1374 = vpack.c.b16 %v1240, %v1238
        %v1375 = vpack.c.b16 %v1243, %v1241
        %v1376 = vpack.c.b16 %v1244, %v1242
        %v1377 = vpack.c.b16 %v1247, %v1245
        %v1378 = vpack.c.b16 %v1248, %v1246
        %v1379 = vpack.c.b16 %v1251, %v1249
        %v1380 = vpack.c.b16 %v1252, %v1250
        %1509 = vmatprep.subr.bf16.mxu0 %v1254
        %1510 = vmatpush1.bf16.msra.mxu0 %v1253
        %1511 = vmatprep.subr.bf16.mxu0 %v1256
        %1512 = vmatpush1.bf16.msra.mxu0 %v1255
        %1513 = vmatprep.subr.bf16.mxu0 %v1258
        %1514 = vmatpush1.bf16.msra.mxu0 %v1257
        %1515 = vmatprep.subr.bf16.mxu0 %v1260
        %1516 = vmatpush1.bf16.msra.mxu0 %v1259
        %1517 = vmatprep.subr.bf16.mxu0 %v1262
        %1518 = vmatpush1.bf16.msra.mxu0 %v1261
        %1519 = vmatprep.subr.bf16.mxu0 %v1264
        %1520 = vmatpush1.bf16.msra.mxu0 %v1263
        %1521 = vmatprep.subr.bf16.mxu0 %v1266
        %1522 = vmatpush1.bf16.msra.mxu0 %v1265
        %1523 = vmatprep.subr.bf16.mxu0 %v1268
        %1524 = vmatpush1.bf16.msra.mxu0 %v1267
        %1525 = vmatprep.subr.bf16.mxu0 %v1270
        %1526 = vmatpush1.bf16.msra.mxu0 %v1269
        %1527 = vmatprep.subr.bf16.mxu0 %v1272
        %1528 = vmatpush1.bf16.msra.mxu0 %v1271
        %1529 = vmatprep.subr.bf16.mxu0 %v1274
        %1530 = vmatpush1.bf16.msra.mxu0 %v1273
        %1531 = vmatprep.subr.bf16.mxu0 %v1276
        %1532 = vmatpush1.bf16.msra.mxu0 %v1275
        %1533 = vmatprep.subr.bf16.mxu0 %v1278
        %1534 = vmatpush1.bf16.msra.mxu0 %v1277
        %1535 = vmatprep.subr.bf16.mxu0 %v1280
        %1536 = vmatpush1.bf16.msra.mxu0 %v1279
        %1537 = vmatprep.subr.bf16.mxu0 %v1282
        %1538 = vmatpush1.bf16.msra.mxu0 %v1281
        %1539 = vmatprep.subr.bf16.mxu0 %v1284
        %1540 = vmatpush1.bf16.msra.mxu0 %v1283
        %1541 = vmatprep.mubr.bf16.mxu0 %v838
        %1542 = vmatmul.mubr.bf16.gmra.mrb[0].mxu0 %v837
        %v1543 = vpop.f32.mrb[0].mxu0
        %v1544 = vadd.f32 %v782, %v1543
        %v1545 = vpop.f32.mrb[0].mxu0
        %v1546 = vadd.f32 %v786, %v1545
        %v1547 = vpop.f32.mrb[0].mxu0
        %v1548 = vadd.f32 %v782, %v1547
        %v1549 = vpop.f32.mrb[0].mxu0
        %v1550 = vadd.f32 %v786, %v1549
        %1551 = vmatprep.mubr.bf16.mxu0 %v846
        %1552 = vmatmul.mubr.bf16.gmra.mrb[0].mxu0 %v845
        %v1553 = vpop.f32.mrb[0].mxu0
        %v1554 = vadd.f32 %v782, %v1553
        %v1555 = vpop.f32.mrb[0].mxu0
        %v1556 = vadd.f32 %v786, %v1555
        %v1557 = vpop.f32.mrb[0].mxu0
        %v1558 = vadd.f32 %v782, %v1557
        %v1559 = vpop.f32.mrb[0].mxu0
        %v1560 = vadd.f32 %v786, %v1559
        %1561 = vdwg.mxu0
        %1562 = vmatprep.subr.bf16.mxu0 %v1286
        %1563 = vmatpush1.bf16.msra.mxu0 %v1285
        %1564 = vmatprep.subr.bf16.mxu0 %v1288
        %1565 = vmatpush1.bf16.msra.mxu0 %v1287
        %1566 = vmatprep.subr.bf16.mxu0 %v1290
        %1567 = vmatpush1.bf16.msra.mxu0 %v1289
        %1568 = vmatprep.subr.bf16.mxu0 %v1292
        %1569 = vmatpush1.bf16.msra.mxu0 %v1291
        %1570 = vmatprep.subr.bf16.mxu0 %v1294
        %1571 = vmatpush1.bf16.msra.mxu0 %v1293
        %1572 = vmatprep.subr.bf16.mxu0 %v1296
        %1573 = vmatpush1.bf16.msra.mxu0 %v1295
        %1574 = vmatprep.subr.bf16.mxu0 %v1298
        %1575 = vmatpush1.bf16.msra.mxu0 %v1297
        %1576 = vmatprep.subr.bf16.mxu0 %v1300
        %1577 = vmatpush1.bf16.msra.mxu0 %v1299
        %1578 = vmatprep.subr.bf16.mxu0 %v1302
        %1579 = vmatpush1.bf16.msra.mxu0 %v1301
        %1580 = vmatprep.subr.bf16.mxu0 %v1304
        %1581 = vmatpush1.bf16.msra.mxu0 %v1303
        %1582 = vmatprep.subr.bf16.mxu0 %v1306
        %1583 = vmatpush1.bf16.msra.mxu0 %v1305
        %1584 = vmatprep.subr.bf16.mxu0 %v1308
        %1585 = vmatpush1.bf16.msra.mxu0 %v1307
        %1586 = vmatprep.subr.bf16.mxu0 %v1310
        %1587 = vmatpush1.bf16.msra.mxu0 %v1309
        %1588 = vmatprep.subr.bf16.mxu0 %v1312
        %1589 = vmatpush1.bf16.msra.mxu0 %v1311
        %1590 = vmatprep.subr.bf16.mxu0 %v1314
        %1591 = vmatpush1.bf16.msra.mxu0 %v1313
        %1592 = vmatprep.subr.bf16.mxu0 %v1316
        %1593 = vmatpush1.bf16.msra.mxu0 %v1315
        %1594 = vmatprep.mubr.bf16.mxu0 %v840
        %1595 = vmatmul.mubr.bf16.gmra.mrb[0].mxu0 %v839
        %v1596 = vpop.f32.mrb[0].mxu0
        %v1597 = vadd.f32 %v1544, %v1596
        %v1598 = vpop.f32.mrb[0].mxu0
        %v1599 = vadd.f32 %v1546, %v1598
        %v1600 = vpop.f32.mrb[0].mxu0
        %v1601 = vadd.f32 %v1548, %v1600
        %v1602 = vpop.f32.mrb[0].mxu0
        %v1603 = vadd.f32 %v1550, %v1602
        %1604 = vmatprep.mubr.bf16.mxu0 %v848
        %1605 = vmatmul.mubr.bf16.gmra.mrb[0].mxu0 %v847
        %v1606 = vpop.f32.mrb[0].mxu0
        %v1607 = vadd.f32 %v1554, %v1606
        %v1608 = vpop.f32.mrb[0].mxu0
        %v1609 = vadd.f32 %v1556, %v1608
        %v1610 = vpop.f32.mrb[0].mxu0
        %v1611 = vadd.f32 %v1558, %v1610
        %v1612 = vpop.f32.mrb[0].mxu0
        %v1613 = vadd.f32 %v1560, %v1612
        %1614 = vdwg.mxu0
        %1615 = vmatprep.subr.bf16.mxu0 %v1318
        %1616 = vmatpush1.bf16.msra.mxu0 %v1317
        %1617 = vmatprep.subr.bf16.mxu0 %v1320
        %1618 = vmatpush1.bf16.msra.mxu0 %v1319
        %1619 = vmatprep.subr.bf16.mxu0 %v1322
        %1620 = vmatpush1.bf16.msra.mxu0 %v1321
        %1621 = vmatprep.subr.bf16.mxu0 %v1324
        %1622 = vmatpush1.bf16.msra.mxu0 %v1323
        %1623 = vmatprep.subr.bf16.mxu0 %v1326
        %1624 = vmatpush1.bf16.msra.mxu0 %v1325
        %1625 = vmatprep.subr.bf16.mxu0 %v1328
        %1626 = vmatpush1.bf16.msra.mxu0 %v1327
        %1627 = vmatprep.subr.bf16.mxu0 %v1330
        %1628 = vmatpush1.bf16.msra.mxu0 %v1329
        %1629 = vmatprep.subr.bf16.mxu0 %v1332
        %1630 = vmatpush1.bf16.msra.mxu0 %v1331
        %1631 = vmatprep.subr.bf16.mxu0 %v1334
        %1632 = vmatpush1.bf16.msra.mxu0 %v1333
        %1633 = vmatprep.subr.bf16.mxu0 %v1336
        %1634 = vmatpush1.bf16.msra.mxu0 %v1335
        %1635 = vmatprep.subr.bf16.mxu0 %v1338
        %1636 = vmatpush1.bf16.msra.mxu0 %v1337
        %1637 = vmatprep.subr.bf16.mxu0 %v1340
        %1638 = vmatpush1.bf16.msra.mxu0 %v1339
        %1639 = vmatprep.subr.bf16.mxu0 %v1342
        %1640 = vmatpush1.bf16.msra.mxu0 %v1341
        %1641 = vmatprep.subr.bf16.mxu0 %v1344
        %1642 = vmatpush1.bf16.msra.mxu0 %v1343
        %1643 = vmatprep.subr.bf16.mxu0 %v1346
        %1644 = vmatpush1.bf16.msra.mxu0 %v1345
        %1645 = vmatprep.subr.bf16.mxu0 %v1348
        %1646 = vmatpush1.bf16.msra.mxu0 %v1347
        %1647 = vmatprep.mubr.bf16.mxu0 %v842
        %1648 = vmatmul.mubr.bf16.gmra.mrb[0].mxu0 %v841
        %v1649 = vpop.f32.mrb[0].mxu0
        %v1650 = vadd.f32 %v1597, %v1649
        %v1651 = vpop.f32.mrb[0].mxu0
        %v1652 = vadd.f32 %v1599, %v1651
        %v1653 = vpop.f32.mrb[0].mxu0
        %v1654 = vadd.f32 %v1601, %v1653
        %v1655 = vpop.f32.mrb[0].mxu0
        %v1656 = vadd.f32 %v1603, %v1655
        %1657 = vmatprep.mubr.bf16.mxu0 %v850
        %1658 = vmatmul.mubr.bf16.gmra.mrb[0].mxu0 %v849
        %v1659 = vpop.f32.mrb[0].mxu0
        %v1660 = vadd.f32 %v1607, %v1659
        %v1661 = vpop.f32.mrb[0].mxu0
        %v1662 = vadd.f32 %v1609, %v1661
        %v1663 = vpop.f32.mrb[0].mxu0
        %v1664 = vadd.f32 %v1611, %v1663
        %v1665 = vpop.f32.mrb[0].mxu0
        %v1666 = vadd.f32 %v1613, %v1665
        %1667 = vdwg.mxu0
        %1668 = vmatprep.subr.bf16.mxu0 %v1350
        %1669 = vmatpush1.bf16.msra.mxu0 %v1349
        %1670 = vmatprep.subr.bf16.mxu0 %v1352
        %1671 = vmatpush1.bf16.msra.mxu0 %v1351
        %1672 = vmatprep.subr.bf16.mxu0 %v1354
        %1673 = vmatpush1.bf16.msra.mxu0 %v1353
        %1674 = vmatprep.subr.bf16.mxu0 %v1356
        %1675 = vmatpush1.bf16.msra.mxu0 %v1355
        %1676 = vmatprep.subr.bf16.mxu0 %v1358
        %1677 = vmatpush1.bf16.msra.mxu0 %v1357
        %1678 = vmatprep.subr.bf16.mxu0 %v1360
        %1679 = vmatpush1.bf16.msra.mxu0 %v1359
        %1680 = vmatprep.subr.bf16.mxu0 %v1362
        %1681 = vmatpush1.bf16.msra.mxu0 %v1361
        %1682 = vmatprep.subr.bf16.mxu0 %v1364
        %1683 = vmatpush1.bf16.msra.mxu0 %v1363
        %1684 = vmatprep.subr.bf16.mxu0 %v1366
        %1685 = vmatpush1.bf16.msra.mxu0 %v1365
        %1686 = vmatprep.subr.bf16.mxu0 %v1368
        %1687 = vmatpush1.bf16.msra.mxu0 %v1367
        %1688 = vmatprep.subr.bf16.mxu0 %v1370
        %1689 = vmatpush1.bf16.msra.mxu0 %v1369
        %1690 = vmatprep.subr.bf16.mxu0 %v1372
        %1691 = vmatpush1.bf16.msra.mxu0 %v1371
        %1692 = vmatprep.subr.bf16.mxu0 %v1374
        %1693 = vmatpush1.bf16.msra.mxu0 %v1373
        %1694 = vmatprep.subr.bf16.mxu0 %v1376
        %1695 = vmatpush1.bf16.msra.mxu0 %v1375
        %1696 = vmatprep.subr.bf16.mxu0 %v1378
        %1697 = vmatpush1.bf16.msra.mxu0 %v1377
        %1698 = vmatprep.subr.bf16.mxu0 %v1380
        %1699 = vmatpush1.bf16.msra.mxu0 %v1379
        %1700 = vmatprep.mubr.bf16.mxu0 %v844
        %1701 = vmatmul.mubr.bf16.gmra.mrb[0].mxu0 %v843
        %v1702 = vpop.f32.mrb[0].mxu0
        %v1703 = vadd.f32 %v1650, %v1702
        %v1704 = vpop.f32.mrb[0].mxu0
        %v1705 = vadd.f32 %v1652, %v1704
        %v1706 = vpop.f32.mrb[0].mxu0
        %v1707 = vadd.f32 %v1654, %v1706
        %v1708 = vpop.f32.mrb[0].mxu0
        %v1709 = vadd.f32 %v1656, %v1708
        %1710 = vmatprep.mubr.bf16.mxu0 %v852
        %1711 = vmatmul.mubr.bf16.gmra.mrb[0].mxu0 %v851
        %v1712 = vpop.f32.mrb[0].mxu0
        %v1713 = vadd.f32 %v1660, %v1712
        %v1714 = vpop.f32.mrb[0].mxu0
        %v1715 = vadd.f32 %v1662, %v1714
        %v1716 = vpop.f32.mrb[0].mxu0
        %v1717 = vadd.f32 %v1664, %v1716
        %v1718 = vpop.f32.mrb[0].mxu0
        %v1719 = vadd.f32 %v1666, %v1718
        %1720 = vdwg.mxu0
        %v1721 = vmax.f32 %v1703, 0.0
        %v1722 = vmax.f32 %v1705, 0.0
        %v1723 = vmax.f32 %v1707, 0.0
        %v1724 = vmax.f32 %v1709, 0.0
        %v1725 = vmax.f32 %v1713, 0.0
        %v1726 = vmax.f32 %v1715, 0.0
        %v1727 = vmax.f32 %v1717, 0.0
        %v1728 = vmax.f32 %v1719, 0.0
        %v1729 = vld [vmem:[#allocation2] sm:$0xff]
        %v1730 = vld [vmem:[#allocation2 + $0x8] sm:$0xff]
        %v1731 = vld [vmem:[#allocation2 + $0x10] sm:$0xff]
        %v1732 = vld [vmem:[#allocation2 + $0x18] sm:$0xff]
        %v1733 = vld [vmem:[#allocation2 + $0x20] sm:$0xff]
        %v1734 = vld [vmem:[#allocation2 + $0x28] sm:$0xff]
        %v1735 = vld [vmem:[#allocation2 + $0x30] sm:$0xff]
        %v1736 = vld [vmem:[#allocation2 + $0x38] sm:$0xff]
        %v1737 = vpack.c.bf16 %v1723, %v1721
        %v1738 = vpack.c.bf16 %v1724, %v1722
        %v1739 = vpack.c.bf16 %v1727, %v1725
        %v1740 = vpack.c.bf16 %v1728, %v1726
        %v1741 = vld [vmem:[%s538] sm:$0xff]
        %v1742 = vld [vmem:[%s538 + $0x8] sm:$0xff]
        %v1743 = vld [vmem:[%s538 + $0x10] sm:$0xff]
        %v1744 = vld [vmem:[%s538 + $0x18] sm:$0xff]
        %v1745 = vld [vmem:[%s538 + $0x20] sm:$0xff]
        %v1746 = vld [vmem:[%s538 + $0x28] sm:$0xff]
        %v1747 = vld [vmem:[%s538 + $0x30] sm:$0xff]
        %v1748 = vld [vmem:[%s538 + $0x38] sm:$0xff]
        %v1749 = vld [vmem:[%s538 + $0x40] sm:$0xff]
        %v1750 = vld [vmem:[%s538 + $0x48] sm:$0xff]
        %v1751 = vld [vmem:[%s538 + $0x50] sm:$0xff]
        %v1752 = vld [vmem:[%s538 + $0x58] sm:$0xff]
        %v1753 = vld [vmem:[%s538 + $0x60] sm:$0xff]
        %v1754 = vld [vmem:[%s538 + $0x68] sm:$0xff]
        %v1755 = vld [vmem:[%s538 + $0x70] sm:$0xff]
        %v1756 = vld [vmem:[%s538 + $0x78] sm:$0xff]
        %v1757 = vld [vmem:[%s538 + $0x80] sm:$0xff]
        %v1758 = vld [vmem:[%s538 + $0x88] sm:$0xff]
        %v1759 = vld [vmem:[%s538 + $0x90] sm:$0xff]
        %v1760 = vld [vmem:[%s538 + $0x98] sm:$0xff]
        %v1761 = vld [vmem:[%s538 + $0xa0] sm:$0xff]
        %v1762 = vld [vmem:[%s538 + $0xa8] sm:$0xff]
        %v1763 = vld [vmem:[%s538 + $0xb0] sm:$0xff]
        %v1764 = vld [vmem:[%s538 + $0xb8] sm:$0xff]
        %v1765 = vld [vmem:[%s538 + $0xc0] sm:$0xff]
        %v1766 = vld [vmem:[%s538 + $0xc8] sm:$0xff]
        %v1767 = vld [vmem:[%s538 + $0xd0] sm:$0xff]
        %v1768 = vld [vmem:[%s538 + $0xd8] sm:$0xff]
        %v1769 = vld [vmem:[%s538 + $0xe0] sm:$0xff]
        %v1770 = vld [vmem:[%s538 + $0xe8] sm:$0xff]
        %v1771 = vld [vmem:[%s538 + $0xf0] sm:$0xff]
        %v1772 = vld [vmem:[%s538 + $0xf8] sm:$0xff]
        %v1805 = vunpack.c.l.b16 %v1741
        %v1806 = vunpack.c.h.b16 %v1741
        %v1807 = vunpack.c.l.b16 %v1742
        %v1808 = vunpack.c.h.b16 %v1742
        %v1809 = vunpack.c.l.b16 %v1743
        %v1810 = vunpack.c.h.b16 %v1743
        %v1811 = vunpack.c.l.b16 %v1744
        %v1812 = vunpack.c.h.b16 %v1744
        %v1813 = vunpack.c.l.b16 %v1745
        %v1814 = vunpack.c.h.b16 %v1745
        %v1815 = vunpack.c.l.b16 %v1746
        %v1816 = vunpack.c.h.b16 %v1746
        %v1817 = vunpack.c.l.b16 %v1747
        %v1818 = vunpack.c.h.b16 %v1747
        %v1819 = vunpack.c.l.b16 %v1748
        %v1820 = vunpack.c.h.b16 %v1748
        %v1821 = vunpack.c.l.b16 %v1749
        %v1822 = vunpack.c.h.b16 %v1749
        %v1823 = vunpack.c.l.b16 %v1750
        %v1824 = vunpack.c.h.b16 %v1750
        %v1825 = vunpack.c.l.b16 %v1751
        %v1826 = vunpack.c.h.b16 %v1751
        %v1827 = vunpack.c.l.b16 %v1752
        %v1828 = vunpack.c.h.b16 %v1752
        %v1829 = vunpack.c.l.b16 %v1753
        %v1830 = vunpack.c.h.b16 %v1753
        %v1831 = vunpack.c.l.b16 %v1754
        %v1832 = vunpack.c.h.b16 %v1754
        %v1833 = vunpack.c.l.b16 %v1755
        %v1834 = vunpack.c.h.b16 %v1755
        %v1835 = vunpack.c.l.b16 %v1756
        %v1836 = vunpack.c.h.b16 %v1756
        %v1837 = vunpack.c.l.b16 %v1757
        %v1838 = vunpack.c.h.b16 %v1757
        %v1839 = vunpack.c.l.b16 %v1758
        %v1840 = vunpack.c.h.b16 %v1758
        %v1841 = vunpack.c.l.b16 %v1759
        %v1842 = vunpack.c.h.b16 %v1759
        %v1843 = vunpack.c.l.b16 %v1760
        %v1844 = vunpack.c.h.b16 %v1760
        %v1845 = vunpack.c.l.b16 %v1761
        %v1846 = vunpack.c.h.b16 %v1761
        %v1847 = vunpack.c.l.b16 %v1762
        %v1848 = vunpack.c.h.b16 %v1762
        %v1849 = vunpack.c.l.b16 %v1763
        %v1850 = vunpack.c.h.b16 %v1763
        %v1851 = vunpack.c.l.b16 %v1764
        %v1852 = vunpack.c.h.b16 %v1764
        %v1853 = vunpack.c.l.b16 %v1765
        %v1854 = vunpack.c.h.b16 %v1765
        %v1855 = vunpack.c.l.b16 %v1766
        %v1856 = vunpack.c.h.b16 %v1766
        %v1857 = vunpack.c.l.b16 %v1767
        %v1858 = vunpack.c.h.b16 %v1767
        %v1859 = vunpack.c.l.b16 %v1768
        %v1860 = vunpack.c.h.b16 %v1768
        %v1861 = vunpack.c.l.b16 %v1769
        %v1862 = vunpack.c.h.b16 %v1769
        %v1863 = vunpack.c.l.b16 %v1770
        %v1864 = vunpack.c.h.b16 %v1770
        %v1865 = vunpack.c.l.b16 %v1771
        %v1866 = vunpack.c.h.b16 %v1771
        %v1867 = vunpack.c.l.b16 %v1772
        %v1868 = vunpack.c.h.b16 %v1772
        %v1869 = vpack.c.b16 %v1807, %v1805
        %v1870 = vpack.c.b16 %v1808, %v1806
        %v1871 = vpack.c.b16 %v1811, %v1809
        %v1872 = vpack.c.b16 %v1812, %v1810
        %v1873 = vpack.c.b16 %v1815, %v1813
        %v1874 = vpack.c.b16 %v1816, %v1814
        %v1875 = vpack.c.b16 %v1819, %v1817
        %v1876 = vpack.c.b16 %v1820, %v1818
        %v1877 = vpack.c.b16 %v1823, %v1821
        %v1878 = vpack.c.b16 %v1824, %v1822
        %v1879 = vpack.c.b16 %v1827, %v1825
        %v1880 = vpack.c.b16 %v1828, %v1826
        %v1881 = vpack.c.b16 %v1831, %v1829
        %v1882 = vpack.c.b16 %v1832, %v1830
        %v1883 = vpack.c.b16 %v1835, %v1833
        %v1884 = vpack.c.b16 %v1836, %v1834
        %v1885 = vpack.c.b16 %v1839, %v1837
        %v1886 = vpack.c.b16 %v1840, %v1838
        %v1887 = vpack.c.b16 %v1843, %v1841
        %v1888 = vpack.c.b16 %v1844, %v1842
        %v1889 = vpack.c.b16 %v1847, %v1845
        %v1890 = vpack.c.b16 %v1848, %v1846
        %v1891 = vpack.c.b16 %v1851, %v1849
        %v1892 = vpack.c.b16 %v1852, %v1850
        %v1893 = vpack.c.b16 %v1855, %v1853
        %v1894 = vpack.c.b16 %v1856, %v1854
        %v1895 = vpack.c.b16 %v1859, %v1857
        %v1896 = vpack.c.b16 %v1860, %v1858
        %v1897 = vpack.c.b16 %v1863, %v1861
        %v1898 = vpack.c.b16 %v1864, %v1862
        %v1899 = vpack.c.b16 %v1867, %v1865
        %v1900 = vpack.c.b16 %v1868, %v1866
        %1933 = vmatprep.subr.bf16.mxu0 %v1870
        %1934 = vmatpush1.bf16.msra.mxu0 %v1869
        %1935 = vmatprep.subr.bf16.mxu0 %v1872
        %1936 = vmatpush1.bf16.msra.mxu0 %v1871
        %1937 = vmatprep.subr.bf16.mxu0 %v1874
        %1938 = vmatpush1.bf16.msra.mxu0 %v1873
        %1939 = vmatprep.subr.bf16.mxu0 %v1876
        %1940 = vmatpush1.bf16.msra.mxu0 %v1875
        %1941 = vmatprep.subr.bf16.mxu0 %v1878
        %1942 = vmatpush1.bf16.msra.mxu0 %v1877
        %1943 = vmatprep.subr.bf16.mxu0 %v1880
        %1944 = vmatpush1.bf16.msra.mxu0 %v1879
        %1945 = vmatprep.subr.bf16.mxu0 %v1882
        %1946 = vmatpush1.bf16.msra.mxu0 %v1881
        %1947 = vmatprep.subr.bf16.mxu0 %v1884
        %1948 = vmatpush1.bf16.msra.mxu0 %v1883
        %1949 = vmatprep.subr.bf16.mxu0 %v1886
        %1950 = vmatpush1.bf16.msra.mxu0 %v1885
        %1951 = vmatprep.subr.bf16.mxu0 %v1888
        %1952 = vmatpush1.bf16.msra.mxu0 %v1887
        %1953 = vmatprep.subr.bf16.mxu0 %v1890
        %1954 = vmatpush1.bf16.msra.mxu0 %v1889
        %1955 = vmatprep.subr.bf16.mxu0 %v1892
        %1956 = vmatpush1.bf16.msra.mxu0 %v1891
        %1957 = vmatprep.subr.bf16.mxu0 %v1894
        %1958 = vmatpush1.bf16.msra.mxu0 %v1893
        %1959 = vmatprep.subr.bf16.mxu0 %v1896
        %1960 = vmatpush1.bf16.msra.mxu0 %v1895
        %1961 = vmatprep.subr.bf16.mxu0 %v1898
        %1962 = vmatpush1.bf16.msra.mxu0 %v1897
        %1963 = vmatprep.subr.bf16.mxu0 %v1900
        %1964 = vmatpush1.bf16.msra.mxu0 %v1899
        %1965 = vmatprep.mubr.bf16.mxu0 %v1738
        %1966 = vmatmul.mubr.bf16.gmra.mrb[0].mxu0 %v1737
        %v1967 = vpop.f32.mrb[0].mxu0
        %v1968 = vadd.f32 0.0, %v1967
        %v1969 = vpop.f32.mrb[0].mxu0
        %v1970 = vadd.f32 0.0, %v1969
        %v1971 = vpop.f32.mrb[0].mxu0
        %v1972 = vadd.f32 0.0, %v1971
        %v1973 = vpop.f32.mrb[0].mxu0
        %v1974 = vadd.f32 0.0, %v1973
        %1975 = vmatprep.mubr.bf16.mxu0 %v1740
        %1976 = vmatmul.mubr.bf16.gmra.mrb[0].mxu0 %v1739
        %v1977 = vpop.f32.mrb[0].mxu0
        %v1978 = vadd.f32 0.0, %v1977
        %v1979 = vpop.f32.mrb[0].mxu0
        %v1980 = vadd.f32 0.0, %v1979
        %v1981 = vpop.f32.mrb[0].mxu0
        %v1982 = vadd.f32 0.0, %v1981
        %v1983 = vpop.f32.mrb[0].mxu0
        %v1984 = vadd.f32 0.0, %v1983
        %1985 = vdwg.mxu0
        %v1986 = vadd.f32 %v1729, %v1968
        %v1987 = vadd.f32 %v1730, %v1970
        %v1988 = vadd.f32 %v1731, %v1972
        %v1989 = vadd.f32 %v1732, %v1974
        %v1990 = vadd.f32 %v1733, %v1978
        %v1991 = vadd.f32 %v1734, %v1980
        %v1992 = vadd.f32 %v1735, %v1982
        %v1993 = vadd.f32 %v1736, %v1984
        %1994 = vst [vmem:[#allocation2] sm:$0xff] %v1986
        %1995 = vst [vmem:[#allocation2 + $0x8] sm:$0xff] %v1987
        %1996 = vst [vmem:[#allocation2 + $0x10] sm:$0xff] %v1988
        %1997 = vst [vmem:[#allocation2 + $0x18] sm:$0xff] %v1989
        %1998 = vst [vmem:[#allocation2 + $0x20] sm:$0xff] %v1990
        %1999 = vst [vmem:[#allocation2 + $0x28] sm:$0xff] %v1991
        %2000 = vst [vmem:[#allocation2 + $0x30] sm:$0xff] %v1992
        %2001 = vst [vmem:[#allocation2 + $0x38] sm:$0xff] %v1993
        %v2002 = vld [vmem:[%s520] sm:$0xff]
        %v2003 = vld [vmem:[%s520 + $0x8] sm:$0xff]
        %v2004 = vld [vmem:[%s520 + $0x10] sm:$0xff]
        %v2005 = vld [vmem:[%s520 + $0x18] sm:$0xff]
        %v2006 = vld [vmem:[%s520 + $0x20] sm:$0xff]
        %v2007 = vld [vmem:[%s520 + $0x28] sm:$0xff]
        %v2008 = vld [vmem:[%s520 + $0x30] sm:$0xff]
        %v2009 = vld [vmem:[%s520 + $0x38] sm:$0xff]
        %v2010 = vld [vmem:[%s520 + $0x40] sm:$0xff]
        %v2011 = vld [vmem:[%s520 + $0x48] sm:$0xff]
        %v2012 = vld [vmem:[%s520 + $0x50] sm:$0xff]
        %v2013 = vld [vmem:[%s520 + $0x58] sm:$0xff]
        %v2014 = vld [vmem:[%s520 + $0x60] sm:$0xff]
        %v2015 = vld [vmem:[%s520 + $0x68] sm:$0xff]
        %v2016 = vld [vmem:[%s520 + $0x70] sm:$0xff]
        %v2017 = vld [vmem:[%s520 + $0x78] sm:$0xff]
        %v2018 = vld [vmem:[%s520 + $0x80] sm:$0xff]
        %v2019 = vld [vmem:[%s520 + $0x88] sm:$0xff]
        %v2020 = vld [vmem:[%s520 + $0x90] sm:$0xff]
        %v2021 = vld [vmem:[%s520 + $0x98] sm:$0xff]
        %v2022 = vld [vmem:[%s520 + $0xa0] sm:$0xff]
        %v2023 = vld [vmem:[%s520 + $0xa8] sm:$0xff]
        %v2024 = vld [vmem:[%s520 + $0xb0] sm:$0xff]
        %v2025 = vld [vmem:[%s520 + $0xb8] sm:$0xff]
        %v2026 = vld [vmem:[%s520 + $0xc0] sm:$0xff]
        %v2027 = vld [vmem:[%s520 + $0xc8] sm:$0xff]
        %v2028 = vld [vmem:[%s520 + $0xd0] sm:$0xff]
        %v2029 = vld [vmem:[%s520 + $0xd8] sm:$0xff]
        %v2030 = vld [vmem:[%s520 + $0xe0] sm:$0xff]
        %v2031 = vld [vmem:[%s520 + $0xe8] sm:$0xff]
        %v2032 = vld [vmem:[%s520 + $0xf0] sm:$0xff]
        %v2033 = vld [vmem:[%s520 + $0xf8] sm:$0xff]
        %v2034 = vld [vmem:[%s520 + $0x100] sm:$0xff]
        %v2035 = vld [vmem:[%s520 + $0x108] sm:$0xff]
        %v2036 = vld [vmem:[%s520 + $0x110] sm:$0xff]
        %v2037 = vld [vmem:[%s520 + $0x118] sm:$0xff]
        %v2038 = vld [vmem:[%s520 + $0x120] sm:$0xff]
        %v2039 = vld [vmem:[%s520 + $0x128] sm:$0xff]
        %v2040 = vld [vmem:[%s520 + $0x130] sm:$0xff]
        %v2041 = vld [vmem:[%s520 + $0x138] sm:$0xff]
        %v2042 = vld [vmem:[%s520 + $0x140] sm:$0xff]
        %v2043 = vld [vmem:[%s520 + $0x148] sm:$0xff]
        %v2044 = vld [vmem:[%s520 + $0x150] sm:$0xff]
        %v2045 = vld [vmem:[%s520 + $0x158] sm:$0xff]
        %v2046 = vld [vmem:[%s520 + $0x160] sm:$0xff]
        %v2047 = vld [vmem:[%s520 + $0x168] sm:$0xff]
        %v2048 = vld [vmem:[%s520 + $0x170] sm:$0xff]
        %v2049 = vld [vmem:[%s520 + $0x178] sm:$0xff]
        %v2050 = vld [vmem:[%s520 + $0x180] sm:$0xff]
        %v2051 = vld [vmem:[%s520 + $0x188] sm:$0xff]
        %v2052 = vld [vmem:[%s520 + $0x190] sm:$0xff]
        %v2053 = vld [vmem:[%s520 + $0x198] sm:$0xff]
        %v2054 = vld [vmem:[%s520 + $0x1a0] sm:$0xff]
        %v2055 = vld [vmem:[%s520 + $0x1a8] sm:$0xff]
        %v2056 = vld [vmem:[%s520 + $0x1b0] sm:$0xff]
        %v2057 = vld [vmem:[%s520 + $0x1b8] sm:$0xff]
        %v2058 = vld [vmem:[%s520 + $0x1c0] sm:$0xff]
        %v2059 = vld [vmem:[%s520 + $0x1c8] sm:$0xff]
        %v2060 = vld [vmem:[%s520 + $0x1d0] sm:$0xff]
        %v2061 = vld [vmem:[%s520 + $0x1d8] sm:$0xff]
        %v2062 = vld [vmem:[%s520 + $0x1e0] sm:$0xff]
        %v2063 = vld [vmem:[%s520 + $0x1e8] sm:$0xff]
        %v2064 = vld [vmem:[%s520 + $0x1f0] sm:$0xff]
        %v2065 = vld [vmem:[%s520 + $0x1f8] sm:$0xff]
        %v2066 = vld [vmem:[%s520 + $0x200] sm:$0xff]
        %v2067 = vld [vmem:[%s520 + $0x208] sm:$0xff]
        %v2068 = vld [vmem:[%s520 + $0x210] sm:$0xff]
        %v2069 = vld [vmem:[%s520 + $0x218] sm:$0xff]
        %v2070 = vld [vmem:[%s520 + $0x220] sm:$0xff]
        %v2071 = vld [vmem:[%s520 + $0x228] sm:$0xff]
        %v2072 = vld [vmem:[%s520 + $0x230] sm:$0xff]
        %v2073 = vld [vmem:[%s520 + $0x238] sm:$0xff]
        %v2074 = vld [vmem:[%s520 + $0x240] sm:$0xff]
        %v2075 = vld [vmem:[%s520 + $0x248] sm:$0xff]
        %v2076 = vld [vmem:[%s520 + $0x250] sm:$0xff]
        %v2077 = vld [vmem:[%s520 + $0x258] sm:$0xff]
        %v2078 = vld [vmem:[%s520 + $0x260] sm:$0xff]
        %v2079 = vld [vmem:[%s520 + $0x268] sm:$0xff]
        %v2080 = vld [vmem:[%s520 + $0x270] sm:$0xff]
        %v2081 = vld [vmem:[%s520 + $0x278] sm:$0xff]
        %v2082 = vld [vmem:[%s520 + $0x280] sm:$0xff]
        %v2083 = vld [vmem:[%s520 + $0x288] sm:$0xff]
        %v2084 = vld [vmem:[%s520 + $0x290] sm:$0xff]
        %v2085 = vld [vmem:[%s520 + $0x298] sm:$0xff]
        %v2086 = vld [vmem:[%s520 + $0x2a0] sm:$0xff]
        %v2087 = vld [vmem:[%s520 + $0x2a8] sm:$0xff]
        %v2088 = vld [vmem:[%s520 + $0x2b0] sm:$0xff]
        %v2089 = vld [vmem:[%s520 + $0x2b8] sm:$0xff]
        %v2090 = vld [vmem:[%s520 + $0x2c0] sm:$0xff]
        %v2091 = vld [vmem:[%s520 + $0x2c8] sm:$0xff]
        %v2092 = vld [vmem:[%s520 + $0x2d0] sm:$0xff]
        %v2093 = vld [vmem:[%s520 + $0x2d8] sm:$0xff]
        %v2094 = vld [vmem:[%s520 + $0x2e0] sm:$0xff]
        %v2095 = vld [vmem:[%s520 + $0x2e8] sm:$0xff]
        %v2096 = vld [vmem:[%s520 + $0x2f0] sm:$0xff]
        %v2097 = vld [vmem:[%s520 + $0x2f8] sm:$0xff]
        %v2098 = vld [vmem:[%s520 + $0x300] sm:$0xff]
        %v2099 = vld [vmem:[%s520 + $0x308] sm:$0xff]
        %v2100 = vld [vmem:[%s520 + $0x310] sm:$0xff]
        %v2101 = vld [vmem:[%s520 + $0x318] sm:$0xff]
        %v2102 = vld [vmem:[%s520 + $0x320] sm:$0xff]
        %v2103 = vld [vmem:[%s520 + $0x328] sm:$0xff]
        %v2104 = vld [vmem:[%s520 + $0x330] sm:$0xff]
        %v2105 = vld [vmem:[%s520 + $0x338] sm:$0xff]
        %v2106 = vld [vmem:[%s520 + $0x340] sm:$0xff]
        %v2107 = vld [vmem:[%s520 + $0x348] sm:$0xff]
        %v2108 = vld [vmem:[%s520 + $0x350] sm:$0xff]
        %v2109 = vld [vmem:[%s520 + $0x358] sm:$0xff]
        %v2110 = vld [vmem:[%s520 + $0x360] sm:$0xff]
        %v2111 = vld [vmem:[%s520 + $0x368] sm:$0xff]
        %v2112 = vld [vmem:[%s520 + $0x370] sm:$0xff]
        %v2113 = vld [vmem:[%s520 + $0x378] sm:$0xff]
        %v2114 = vld [vmem:[%s520 + $0x380] sm:$0xff]
        %v2115 = vld [vmem:[%s520 + $0x388] sm:$0xff]
        %v2116 = vld [vmem:[%s520 + $0x390] sm:$0xff]
        %v2117 = vld [vmem:[%s520 + $0x398] sm:$0xff]
        %v2118 = vld [vmem:[%s520 + $0x3a0] sm:$0xff]
        %v2119 = vld [vmem:[%s520 + $0x3a8] sm:$0xff]
        %v2120 = vld [vmem:[%s520 + $0x3b0] sm:$0xff]
        %v2121 = vld [vmem:[%s520 + $0x3b8] sm:$0xff]
        %v2122 = vld [vmem:[%s520 + $0x3c0] sm:$0xff]
        %v2123 = vld [vmem:[%s520 + $0x3c8] sm:$0xff]
        %v2124 = vld [vmem:[%s520 + $0x3d0] sm:$0xff]
        %v2125 = vld [vmem:[%s520 + $0x3d8] sm:$0xff]
        %v2126 = vld [vmem:[%s520 + $0x3e0] sm:$0xff]
        %v2127 = vld [vmem:[%s520 + $0x3e8] sm:$0xff]
        %v2128 = vld [vmem:[%s520 + $0x3f0] sm:$0xff]
        %v2129 = vld [vmem:[%s520 + $0x3f8] sm:$0xff]
        %v2130 = vld [vmem:[%s529] sm:$0x3]
        %v2132 = vlaneseq
        %v2133 = vshrl.u32 %v2132, 7
        %v2134 = vsub.s32 0, %v2133
        %v2135 = vrot.slane %v2130, %v2134
        %v2136 = vlaneseq
        %v2137 = vshrl.u32 %v2136, 7
        %v2138 = vsub.s32 1, %v2137
        %v2139 = vrot.slane %v2130, %v2138
        %v2270 = vunpack.c.l.b16 %v2002
        %v2271 = vunpack.c.h.b16 %v2002
        %v2272 = vunpack.c.l.b16 %v2003
        %v2273 = vunpack.c.h.b16 %v2003
        %v2274 = vunpack.c.l.b16 %v2004
        %v2275 = vunpack.c.h.b16 %v2004
        %v2276 = vunpack.c.l.b16 %v2005
        %v2277 = vunpack.c.h.b16 %v2005
        %v2278 = vunpack.c.l.b16 %v2006
        %v2279 = vunpack.c.h.b16 %v2006
        %v2280 = vunpack.c.l.b16 %v2007
        %v2281 = vunpack.c.h.b16 %v2007
        %v2282 = vunpack.c.l.b16 %v2008
        %v2283 = vunpack.c.h.b16 %v2008
        %v2284 = vunpack.c.l.b16 %v2009
        %v2285 = vunpack.c.h.b16 %v2009
        %v2286 = vunpack.c.l.b16 %v2010
        %v2287 = vunpack.c.h.b16 %v2010
        %v2288 = vunpack.c.l.b16 %v2011
        %v2289 = vunpack.c.h.b16 %v2011
        %v2290 = vunpack.c.l.b16 %v2012
        %v2291 = vunpack.c.h.b16 %v2012
        %v2292 = vunpack.c.l.b16 %v2013
        %v2293 = vunpack.c.h.b16 %v2013
        %v2294 = vunpack.c.l.b16 %v2014
        %v2295 = vunpack.c.h.b16 %v2014
        %v2296 = vunpack.c.l.b16 %v2015
        %v2297 = vunpack.c.h.b16 %v2015
        %v2298 = vunpack.c.l.b16 %v2016
        %v2299 = vunpack.c.h.b16 %v2016
        %v2300 = vunpack.c.l.b16 %v2017
        %v2301 = vunpack.c.h.b16 %v2017
        %v2302 = vunpack.c.l.b16 %v2018
        %v2303 = vunpack.c.h.b16 %v2018
        %v2304 = vunpack.c.l.b16 %v2019
        %v2305 = vunpack.c.h.b16 %v2019
        %v2306 = vunpack.c.l.b16 %v2020
        %v2307 = vunpack.c.h.b16 %v2020
        %v2308 = vunpack.c.l.b16 %v2021
        %v2309 = vunpack.c.h.b16 %v2021
        %v2310 = vunpack.c.l.b16 %v2022
        %v2311 = vunpack.c.h.b16 %v2022
        %v2312 = vunpack.c.l.b16 %v2023
        %v2313 = vunpack.c.h.b16 %v2023
        %v2314 = vunpack.c.l.b16 %v2024
        %v2315 = vunpack.c.h.b16 %v2024
        %v2316 = vunpack.c.l.b16 %v2025
        %v2317 = vunpack.c.h.b16 %v2025
        %v2318 = vunpack.c.l.b16 %v2026
        %v2319 = vunpack.c.h.b16 %v2026
        %v2320 = vunpack.c.l.b16 %v2027
        %v2321 = vunpack.c.h.b16 %v2027
        %v2322 = vunpack.c.l.b16 %v2028
        %v2323 = vunpack.c.h.b16 %v2028
        %v2324 = vunpack.c.l.b16 %v2029
        %v2325 = vunpack.c.h.b16 %v2029
        %v2326 = vunpack.c.l.b16 %v2030
        %v2327 = vunpack.c.h.b16 %v2030
        %v2328 = vunpack.c.l.b16 %v2031
        %v2329 = vunpack.c.h.b16 %v2031
        %v2330 = vunpack.c.l.b16 %v2032
        %v2331 = vunpack.c.h.b16 %v2032
        %v2332 = vunpack.c.l.b16 %v2033
        %v2333 = vunpack.c.h.b16 %v2033
        %v2334 = vunpack.c.l.b16 %v2034
        %v2335 = vunpack.c.h.b16 %v2034
        %v2336 = vunpack.c.l.b16 %v2035
        %v2337 = vunpack.c.h.b16 %v2035
        %v2338 = vunpack.c.l.b16 %v2036
        %v2339 = vunpack.c.h.b16 %v2036
        %v2340 = vunpack.c.l.b16 %v2037
        %v2341 = vunpack.c.h.b16 %v2037
        %v2342 = vunpack.c.l.b16 %v2038
        %v2343 = vunpack.c.h.b16 %v2038
        %v2344 = vunpack.c.l.b16 %v2039
        %v2345 = vunpack.c.h.b16 %v2039
        %v2346 = vunpack.c.l.b16 %v2040
        %v2347 = vunpack.c.h.b16 %v2040
        %v2348 = vunpack.c.l.b16 %v2041
        %v2349 = vunpack.c.h.b16 %v2041
        %v2350 = vunpack.c.l.b16 %v2042
        %v2351 = vunpack.c.h.b16 %v2042
        %v2352 = vunpack.c.l.b16 %v2043
        %v2353 = vunpack.c.h.b16 %v2043
        %v2354 = vunpack.c.l.b16 %v2044
        %v2355 = vunpack.c.h.b16 %v2044
        %v2356 = vunpack.c.l.b16 %v2045
        %v2357 = vunpack.c.h.b16 %v2045
        %v2358 = vunpack.c.l.b16 %v2046
        %v2359 = vunpack.c.h.b16 %v2046
        %v2360 = vunpack.c.l.b16 %v2047
        %v2361 = vunpack.c.h.b16 %v2047
        %v2362 = vunpack.c.l.b16 %v2048
        %v2363 = vunpack.c.h.b16 %v2048
        %v2364 = vunpack.c.l.b16 %v2049
        %v2365 = vunpack.c.h.b16 %v2049
        %v2366 = vunpack.c.l.b16 %v2050
        %v2367 = vunpack.c.h.b16 %v2050
        %v2368 = vunpack.c.l.b16 %v2051
        %v2369 = vunpack.c.h.b16 %v2051
        %v2370 = vunpack.c.l.b16 %v2052
        %v2371 = vunpack.c.h.b16 %v2052
        %v2372 = vunpack.c.l.b16 %v2053
        %v2373 = vunpack.c.h.b16 %v2053
        %v2374 = vunpack.c.l.b16 %v2054
        %v2375 = vunpack.c.h.b16 %v2054
        %v2376 = vunpack.c.l.b16 %v2055
        %v2377 = vunpack.c.h.b16 %v2055
        %v2378 = vunpack.c.l.b16 %v2056
        %v2379 = vunpack.c.h.b16 %v2056
        %v2380 = vunpack.c.l.b16 %v2057
        %v2381 = vunpack.c.h.b16 %v2057
        %v2382 = vunpack.c.l.b16 %v2058
        %v2383 = vunpack.c.h.b16 %v2058
        %v2384 = vunpack.c.l.b16 %v2059
        %v2385 = vunpack.c.h.b16 %v2059
        %v2386 = vunpack.c.l.b16 %v2060
        %v2387 = vunpack.c.h.b16 %v2060
        %v2388 = vunpack.c.l.b16 %v2061
        %v2389 = vunpack.c.h.b16 %v2061
        %v2390 = vunpack.c.l.b16 %v2062
        %v2391 = vunpack.c.h.b16 %v2062
        %v2392 = vunpack.c.l.b16 %v2063
        %v2393 = vunpack.c.h.b16 %v2063
        %v2394 = vunpack.c.l.b16 %v2064
        %v2395 = vunpack.c.h.b16 %v2064
        %v2396 = vunpack.c.l.b16 %v2065
        %v2397 = vunpack.c.h.b16 %v2065
        %v2398 = vunpack.c.l.b16 %v2066
        %v2399 = vunpack.c.h.b16 %v2066
        %v2400 = vunpack.c.l.b16 %v2067
        %v2401 = vunpack.c.h.b16 %v2067
        %v2402 = vunpack.c.l.b16 %v2068
        %v2403 = vunpack.c.h.b16 %v2068
        %v2404 = vunpack.c.l.b16 %v2069
        %v2405 = vunpack.c.h.b16 %v2069
        %v2406 = vunpack.c.l.b16 %v2070
        %v2407 = vunpack.c.h.b16 %v2070
        %v2408 = vunpack.c.l.b16 %v2071
        %v2409 = vunpack.c.h.b16 %v2071
        %v2410 = vunpack.c.l.b16 %v2072
        %v2411 = vunpack.c.h.b16 %v2072
        %v2412 = vunpack.c.l.b16 %v2073
        %v2413 = vunpack.c.h.b16 %v2073
        %v2414 = vunpack.c.l.b16 %v2074
        %v2415 = vunpack.c.h.b16 %v2074
        %v2416 = vunpack.c.l.b16 %v2075
        %v2417 = vunpack.c.h.b16 %v2075
        %v2418 = vunpack.c.l.b16 %v2076
        %v2419 = vunpack.c.h.b16 %v2076
        %v2420 = vunpack.c.l.b16 %v2077
        %v2421 = vunpack.c.h.b16 %v2077
        %v2422 = vunpack.c.l.b16 %v2078
        %v2423 = vunpack.c.h.b16 %v2078
        %v2424 = vunpack.c.l.b16 %v2079
        %v2425 = vunpack.c.h.b16 %v2079
        %v2426 = vunpack.c.l.b16 %v2080
        %v2427 = vunpack.c.h.b16 %v2080
        %v2428 = vunpack.c.l.b16 %v2081
        %v2429 = vunpack.c.h.b16 %v2081
        %v2430 = vunpack.c.l.b16 %v2082
        %v2431 = vunpack.c.h.b16 %v2082
        %v2432 = vunpack.c.l.b16 %v2083
        %v2433 = vunpack.c.h.b16 %v2083
        %v2434 = vunpack.c.l.b16 %v2084
        %v2435 = vunpack.c.h.b16 %v2084
        %v2436 = vunpack.c.l.b16 %v2085
        %v2437 = vunpack.c.h.b16 %v2085
        %v2438 = vunpack.c.l.b16 %v2086
        %v2439 = vunpack.c.h.b16 %v2086
        %v2440 = vunpack.c.l.b16 %v2087
        %v2441 = vunpack.c.h.b16 %v2087
        %v2442 = vunpack.c.l.b16 %v2088
        %v2443 = vunpack.c.h.b16 %v2088
        %v2444 = vunpack.c.l.b16 %v2089
        %v2445 = vunpack.c.h.b16 %v2089
        %v2446 = vunpack.c.l.b16 %v2090
        %v2447 = vunpack.c.h.b16 %v2090
        %v2448 = vunpack.c.l.b16 %v2091
        %v2449 = vunpack.c.h.b16 %v2091
        %v2450 = vunpack.c.l.b16 %v2092
        %v2451 = vunpack.c.h.b16 %v2092
        %v2452 = vunpack.c.l.b16 %v2093
        %v2453 = vunpack.c.h.b16 %v2093
        %v2454 = vunpack.c.l.b16 %v2094
        %v2455 = vunpack.c.h.b16 %v2094
        %v2456 = vunpack.c.l.b16 %v2095
        %v2457 = vunpack.c.h.b16 %v2095
        %v2458 = vunpack.c.l.b16 %v2096
        %v2459 = vunpack.c.h.b16 %v2096
        %v2460 = vunpack.c.l.b16 %v2097
        %v2461 = vunpack.c.h.b16 %v2097
        %v2462 = vunpack.c.l.b16 %v2098
        %v2463 = vunpack.c.h.b16 %v2098
        %v2464 = vunpack.c.l.b16 %v2099
        %v2465 = vunpack.c.h.b16 %v2099
        %v2466 = vunpack.c.l.b16 %v2100
        %v2467 = vunpack.c.h.b16 %v2100
        %v2468 = vunpack.c.l.b16 %v2101
        %v2469 = vunpack.c.h.b16 %v2101
        %v2470 = vunpack.c.l.b16 %v2102
        %v2471 = vunpack.c.h.b16 %v2102
        %v2472 = vunpack.c.l.b16 %v2103
        %v2473 = vunpack.c.h.b16 %v2103
        %v2474 = vunpack.c.l.b16 %v2104
        %v2475 = vunpack.c.h.b16 %v2104
        %v2476 = vunpack.c.l.b16 %v2105
        %v2477 = vunpack.c.h.b16 %v2105
        %v2478 = vunpack.c.l.b16 %v2106
        %v2479 = vunpack.c.h.b16 %v2106
        %v2480 = vunpack.c.l.b16 %v2107
        %v2481 = vunpack.c.h.b16 %v2107
        %v2482 = vunpack.c.l.b16 %v2108
        %v2483 = vunpack.c.h.b16 %v2108
        %v2484 = vunpack.c.l.b16 %v2109
        %v2485 = vunpack.c.h.b16 %v2109
        %v2486 = vunpack.c.l.b16 %v2110
        %v2487 = vunpack.c.h.b16 %v2110
        %v2488 = vunpack.c.l.b16 %v2111
        %v2489 = vunpack.c.h.b16 %v2111
        %v2490 = vunpack.c.l.b16 %v2112
        %v2491 = vunpack.c.h.b16 %v2112
        %v2492 = vunpack.c.l.b16 %v2113
        %v2493 = vunpack.c.h.b16 %v2113
        %v2494 = vunpack.c.l.b16 %v2114
        %v2495 = vunpack.c.h.b16 %v2114
        %v2496 = vunpack.c.l.b16 %v2115
        %v2497 = vunpack.c.h.b16 %v2115
        %v2498 = vunpack.c.l.b16 %v2116
        %v2499 = vunpack.c.h.b16 %v2116
        %v2500 = vunpack.c.l.b16 %v2117
        %v2501 = vunpack.c.h.b16 %v2117
        %v2502 = vunpack.c.l.b16 %v2118
        %v2503 = vunpack.c.h.b16 %v2118
        %v2504 = vunpack.c.l.b16 %v2119
        %v2505 = vunpack.c.h.b16 %v2119
        %v2506 = vunpack.c.l.b16 %v2120
        %v2507 = vunpack.c.h.b16 %v2120
        %v2508 = vunpack.c.l.b16 %v2121
        %v2509 = vunpack.c.h.b16 %v2121
        %v2510 = vunpack.c.l.b16 %v2122
        %v2511 = vunpack.c.h.b16 %v2122
        %v2512 = vunpack.c.l.b16 %v2123
        %v2513 = vunpack.c.h.b16 %v2123
        %v2514 = vunpack.c.l.b16 %v2124
        %v2515 = vunpack.c.h.b16 %v2124
        %v2516 = vunpack.c.l.b16 %v2125
        %v2517 = vunpack.c.h.b16 %v2125
        %v2518 = vunpack.c.l.b16 %v2126
        %v2519 = vunpack.c.h.b16 %v2126
        %v2520 = vunpack.c.l.b16 %v2127
        %v2521 = vunpack.c.h.b16 %v2127
        %v2522 = vunpack.c.l.b16 %v2128
        %v2523 = vunpack.c.h.b16 %v2128
        %v2524 = vunpack.c.l.b16 %v2129
        %v2525 = vunpack.c.h.b16 %v2129
        %v2526 = vpack.c.b16 %v2272, %v2270
        %v2527 = vpack.c.b16 %v2273, %v2271
        %v2528 = vpack.c.b16 %v2276, %v2274
        %v2529 = vpack.c.b16 %v2277, %v2275
        %v2530 = vpack.c.b16 %v2280, %v2278
        %v2531 = vpack.c.b16 %v2281, %v2279
        %v2532 = vpack.c.b16 %v2284, %v2282
        %v2533 = vpack.c.b16 %v2285, %v2283
        %v2534 = vpack.c.b16 %v2288, %v2286
        %v2535 = vpack.c.b16 %v2289, %v2287
        %v2536 = vpack.c.b16 %v2292, %v2290
        %v2537 = vpack.c.b16 %v2293, %v2291
        %v2538 = vpack.c.b16 %v2296, %v2294
        %v2539 = vpack.c.b16 %v2297, %v2295
        %v2540 = vpack.c.b16 %v2300, %v2298
        %v2541 = vpack.c.b16 %v2301, %v2299
        %v2542 = vpack.c.b16 %v2304, %v2302
        %v2543 = vpack.c.b16 %v2305, %v2303
        %v2544 = vpack.c.b16 %v2308, %v2306
        %v2545 = vpack.c.b16 %v2309, %v2307
        %v2546 = vpack.c.b16 %v2312, %v2310
        %v2547 = vpack.c.b16 %v2313, %v2311
        %v2548 = vpack.c.b16 %v2316, %v2314
        %v2549 = vpack.c.b16 %v2317, %v2315
        %v2550 = vpack.c.b16 %v2320, %v2318
        %v2551 = vpack.c.b16 %v2321, %v2319
        %v2552 = vpack.c.b16 %v2324, %v2322
        %v2553 = vpack.c.b16 %v2325, %v2323
        %v2554 = vpack.c.b16 %v2328, %v2326
        %v2555 = vpack.c.b16 %v2329, %v2327
        %v2556 = vpack.c.b16 %v2332, %v2330
        %v2557 = vpack.c.b16 %v2333, %v2331
        %v2558 = vpack.c.b16 %v2336, %v2334
        %v2559 = vpack.c.b16 %v2337, %v2335
        %v2560 = vpack.c.b16 %v2340, %v2338
        %v2561 = vpack.c.b16 %v2341, %v2339
        %v2562 = vpack.c.b16 %v2344, %v2342
        %v2563 = vpack.c.b16 %v2345, %v2343
        %v2564 = vpack.c.b16 %v2348, %v2346
        %v2565 = vpack.c.b16 %v2349, %v2347
        %v2566 = vpack.c.b16 %v2352, %v2350
        %v2567 = vpack.c.b16 %v2353, %v2351
        %v2568 = vpack.c.b16 %v2356, %v2354
        %v2569 = vpack.c.b16 %v2357, %v2355
        %v2570 = vpack.c.b16 %v2360, %v2358
        %v2571 = vpack.c.b16 %v2361, %v2359
        %v2572 = vpack.c.b16 %v2364, %v2362
        %v2573 = vpack.c.b16 %v2365, %v2363
        %v2574 = vpack.c.b16 %v2368, %v2366
        %v2575 = vpack.c.b16 %v2369, %v2367
        %v2576 = vpack.c.b16 %v2372, %v2370
        %v2577 = vpack.c.b16 %v2373, %v2371
        %v2578 = vpack.c.b16 %v2376, %v2374
        %v2579 = vpack.c.b16 %v2377, %v2375
        %v2580 = vpack.c.b16 %v2380, %v2378
        %v2581 = vpack.c.b16 %v2381, %v2379
        %v2582 = vpack.c.b16 %v2384, %v2382
        %v2583 = vpack.c.b16 %v2385, %v2383
        %v2584 = vpack.c.b16 %v2388, %v2386
        %v2585 = vpack.c.b16 %v2389, %v2387
        %v2586 = vpack.c.b16 %v2392, %v2390
        %v2587 = vpack.c.b16 %v2393, %v2391
        %v2588 = vpack.c.b16 %v2396, %v2394
        %v2589 = vpack.c.b16 %v2397, %v2395
        %v2590 = vpack.c.b16 %v2400, %v2398
        %v2591 = vpack.c.b16 %v2401, %v2399
        %v2592 = vpack.c.b16 %v2404, %v2402
        %v2593 = vpack.c.b16 %v2405, %v2403
        %v2594 = vpack.c.b16 %v2408, %v2406
        %v2595 = vpack.c.b16 %v2409, %v2407
        %v2596 = vpack.c.b16 %v2412, %v2410
        %v2597 = vpack.c.b16 %v2413, %v2411
        %v2598 = vpack.c.b16 %v2416, %v2414
        %v2599 = vpack.c.b16 %v2417, %v2415
        %v2600 = vpack.c.b16 %v2420, %v2418
        %v2601 = vpack.c.b16 %v2421, %v2419
        %v2602 = vpack.c.b16 %v2424, %v2422
        %v2603 = vpack.c.b16 %v2425, %v2423
        %v2604 = vpack.c.b16 %v2428, %v2426
        %v2605 = vpack.c.b16 %v2429, %v2427
        %v2606 = vpack.c.b16 %v2432, %v2430
        %v2607 = vpack.c.b16 %v2433, %v2431
        %v2608 = vpack.c.b16 %v2436, %v2434
        %v2609 = vpack.c.b16 %v2437, %v2435
        %v2610 = vpack.c.b16 %v2440, %v2438
        %v2611 = vpack.c.b16 %v2441, %v2439
        %v2612 = vpack.c.b16 %v2444, %v2442
        %v2613 = vpack.c.b16 %v2445, %v2443
        %v2614 = vpack.c.b16 %v2448, %v2446
        %v2615 = vpack.c.b16 %v2449, %v2447
        %v2616 = vpack.c.b16 %v2452, %v2450
        %v2617 = vpack.c.b16 %v2453, %v2451
        %v2618 = vpack.c.b16 %v2456, %v2454
        %v2619 = vpack.c.b16 %v2457, %v2455
        %v2620 = vpack.c.b16 %v2460, %v2458
        %v2621 = vpack.c.b16 %v2461, %v2459
        %v2622 = vpack.c.b16 %v2464, %v2462
        %v2623 = vpack.c.b16 %v2465, %v2463
        %v2624 = vpack.c.b16 %v2468, %v2466
        %v2625 = vpack.c.b16 %v2469, %v2467
        %v2626 = vpack.c.b16 %v2472, %v2470
        %v2627 = vpack.c.b16 %v2473, %v2471
        %v2628 = vpack.c.b16 %v2476, %v2474
        %v2629 = vpack.c.b16 %v2477, %v2475
        %v2630 = vpack.c.b16 %v2480, %v2478
        %v2631 = vpack.c.b16 %v2481, %v2479
        %v2632 = vpack.c.b16 %v2484, %v2482
        %v2633 = vpack.c.b16 %v2485, %v2483
        %v2634 = vpack.c.b16 %v2488, %v2486
        %v2635 = vpack.c.b16 %v2489, %v2487
        %v2636 = vpack.c.b16 %v2492, %v2490
        %v2637 = vpack.c.b16 %v2493, %v2491
        %v2638 = vpack.c.b16 %v2496, %v2494
        %v2639 = vpack.c.b16 %v2497, %v2495
        %v2640 = vpack.c.b16 %v2500, %v2498
        %v2641 = vpack.c.b16 %v2501, %v2499
        %v2642 = vpack.c.b16 %v2504, %v2502
        %v2643 = vpack.c.b16 %v2505, %v2503
        %v2644 = vpack.c.b16 %v2508, %v2506
        %v2645 = vpack.c.b16 %v2509, %v2507
        %v2646 = vpack.c.b16 %v2512, %v2510
        %v2647 = vpack.c.b16 %v2513, %v2511
        %v2648 = vpack.c.b16 %v2516, %v2514
        %v2649 = vpack.c.b16 %v2517, %v2515
        %v2650 = vpack.c.b16 %v2520, %v2518
        %v2651 = vpack.c.b16 %v2521, %v2519
        %v2652 = vpack.c.b16 %v2524, %v2522
        %v2653 = vpack.c.b16 %v2525, %v2523
        %2782 = vmatprep.subr.bf16.mxu0 %v2527
        %2783 = vmatpush1.bf16.msra.mxu0 %v2526
        %2784 = vmatprep.subr.bf16.mxu0 %v2529
        %2785 = vmatpush1.bf16.msra.mxu0 %v2528
        %2786 = vmatprep.subr.bf16.mxu0 %v2531
        %2787 = vmatpush1.bf16.msra.mxu0 %v2530
        %2788 = vmatprep.subr.bf16.mxu0 %v2533
        %2789 = vmatpush1.bf16.msra.mxu0 %v2532
        %2790 = vmatprep.subr.bf16.mxu0 %v2535
        %2791 = vmatpush1.bf16.msra.mxu0 %v2534
        %2792 = vmatprep.subr.bf16.mxu0 %v2537
        %2793 = vmatpush1.bf16.msra.mxu0 %v2536
        %2794 = vmatprep.subr.bf16.mxu0 %v2539
        %2795 = vmatpush1.bf16.msra.mxu0 %v2538
        %2796 = vmatprep.subr.bf16.mxu0 %v2541
        %2797 = vmatpush1.bf16.msra.mxu0 %v2540
        %2798 = vmatprep.subr.bf16.mxu0 %v2543
        %2799 = vmatpush1.bf16.msra.mxu0 %v2542
        %2800 = vmatprep.subr.bf16.mxu0 %v2545
        %2801 = vmatpush1.bf16.msra.mxu0 %v2544
        %2802 = vmatprep.subr.bf16.mxu0 %v2547
        %2803 = vmatpush1.bf16.msra.mxu0 %v2546
        %2804 = vmatprep.subr.bf16.mxu0 %v2549
        %2805 = vmatpush1.bf16.msra.mxu0 %v2548
        %2806 = vmatprep.subr.bf16.mxu0 %v2551
        %2807 = vmatpush1.bf16.msra.mxu0 %v2550
        %2808 = vmatprep.subr.bf16.mxu0 %v2553
        %2809 = vmatpush1.bf16.msra.mxu0 %v2552
        %2810 = vmatprep.subr.bf16.mxu0 %v2555
        %2811 = vmatpush1.bf16.msra.mxu0 %v2554
        %2812 = vmatprep.subr.bf16.mxu0 %v2557
        %2813 = vmatpush1.bf16.msra.mxu0 %v2556
        %2814 = vmatprep.mubr.bf16.mxu0 %v838
        %2815 = vmatmul.mubr.bf16.gmra.mrb[0].mxu0 %v837
        %v2816 = vpop.f32.mrb[0].mxu0
        %v2817 = vadd.f32 %v2135, %v2816
        %v2818 = vpop.f32.mrb[0].mxu0
        %v2819 = vadd.f32 %v2139, %v2818
        %v2820 = vpop.f32.mrb[0].mxu0
        %v2821 = vadd.f32 %v2135, %v2820
        %v2822 = vpop.f32.mrb[0].mxu0
        %v2823 = vadd.f32 %v2139, %v2822
        %2824 = vmatprep.mubr.bf16.mxu0 %v846
        %2825 = vmatmul.mubr.bf16.gmra.mrb[0].mxu0 %v845
        %v2826 = vpop.f32.mrb[0].mxu0
        %v2827 = vadd.f32 %v2135, %v2826
        %v2828 = vpop.f32.mrb[0].mxu0
        %v2829 = vadd.f32 %v2139, %v2828
        %v2830 = vpop.f32.mrb[0].mxu0
        %v2831 = vadd.f32 %v2135, %v2830
        %v2832 = vpop.f32.mrb[0].mxu0
        %v2833 = vadd.f32 %v2139, %v2832
        %2834 = vdwg.mxu0
        %2835 = vmatprep.subr.bf16.mxu0 %v2559
        %2836 = vmatpush1.bf16.msra.mxu0 %v2558
        %2837 = vmatprep.subr.bf16.mxu0 %v2561
        %2838 = vmatpush1.bf16.msra.mxu0 %v2560
        %2839 = vmatprep.subr.bf16.mxu0 %v2563
        %2840 = vmatpush1.bf16.msra.mxu0 %v2562
        %2841 = vmatprep.subr.bf16.mxu0 %v2565
        %2842 = vmatpush1.bf16.msra.mxu0 %v2564
        %2843 = vmatprep.subr.bf16.mxu0 %v2567
        %2844 = vmatpush1.bf16.msra.mxu0 %v2566
        %2845 = vmatprep.subr.bf16.mxu0 %v2569
        %2846 = vmatpush1.bf16.msra.mxu0 %v2568
        %2847 = vmatprep.subr.bf16.mxu0 %v2571
        %2848 = vmatpush1.bf16.msra.mxu0 %v2570
        %2849 = vmatprep.subr.bf16.mxu0 %v2573
        %2850 = vmatpush1.bf16.msra.mxu0 %v2572
        %2851 = vmatprep.subr.bf16.mxu0 %v2575
        %2852 = vmatpush1.bf16.msra.mxu0 %v2574
        %2853 = vmatprep.subr.bf16.mxu0 %v2577
        %2854 = vmatpush1.bf16.msra.mxu0 %v2576
        %2855 = vmatprep.subr.bf16.mxu0 %v2579
        %2856 = vmatpush1.bf16.msra.mxu0 %v2578
        %2857 = vmatprep.subr.bf16.mxu0 %v2581
        %2858 = vmatpush1.bf16.msra.mxu0 %v2580
        %2859 = vmatprep.subr.bf16.mxu0 %v2583
        %2860 = vmatpush1.bf16.msra.mxu0 %v2582
        %2861 = vmatprep.subr.bf16.mxu0 %v2585
        %2862 = vmatpush1.bf16.msra.mxu0 %v2584
        %2863 = vmatprep.subr.bf16.mxu0 %v2587
        %2864 = vmatpush1.bf16.msra.mxu0 %v2586
        %2865 = vmatprep.subr.bf16.mxu0 %v2589
        %2866 = vmatpush1.bf16.msra.mxu0 %v2588
        %2867 = vmatprep.mubr.bf16.mxu0 %v840
        %2868 = vmatmul.mubr.bf16.gmra.mrb[0].mxu0 %v839
        %v2869 = vpop.f32.mrb[0].mxu0
        %v2870 = vadd.f32 %v2817, %v2869
        %v2871 = vpop.f32.mrb[0].mxu0
        %v2872 = vadd.f32 %v2819, %v2871
        %v2873 = vpop.f32.mrb[0].mxu0
        %v2874 = vadd.f32 %v2821, %v2873
        %v2875 = vpop.f32.mrb[0].mxu0
        %v2876 = vadd.f32 %v2823, %v2875
        %2877 = vmatprep.mubr.bf16.mxu0 %v848
        %2878 = vmatmul.mubr.bf16.gmra.mrb[0].mxu0 %v847
        %v2879 = vpop.f32.mrb[0].mxu0
        %v2880 = vadd.f32 %v2827, %v2879
        %v2881 = vpop.f32.mrb[0].mxu0
        %v2882 = vadd.f32 %v2829, %v2881
        %v2883 = vpop.f32.mrb[0].mxu0
        %v2884 = vadd.f32 %v2831, %v2883
        %v2885 = vpop.f32.mrb[0].mxu0
        %v2886 = vadd.f32 %v2833, %v2885
        %2887 = vdwg.mxu0
        %2888 = vmatprep.subr.bf16.mxu0 %v2591
        %2889 = vmatpush1.bf16.msra.mxu0 %v2590
        %2890 = vmatprep.subr.bf16.mxu0 %v2593
        %2891 = vmatpush1.bf16.msra.mxu0 %v2592
        %2892 = vmatprep.subr.bf16.mxu0 %v2595
        %2893 = vmatpush1.bf16.msra.mxu0 %v2594
        %2894 = vmatprep.subr.bf16.mxu0 %v2597
        %2895 = vmatpush1.bf16.msra.mxu0 %v2596
        %2896 = vmatprep.subr.bf16.mxu0 %v2599
        %2897 = vmatpush1.bf16.msra.mxu0 %v2598
        %2898 = vmatprep.subr.bf16.mxu0 %v2601
        %2899 = vmatpush1.bf16.msra.mxu0 %v2600
        %2900 = vmatprep.subr.bf16.mxu0 %v2603
        %2901 = vmatpush1.bf16.msra.mxu0 %v2602
        %2902 = vmatprep.subr.bf16.mxu0 %v2605
        %2903 = vmatpush1.bf16.msra.mxu0 %v2604
        %2904 = vmatprep.subr.bf16.mxu0 %v2607
        %2905 = vmatpush1.bf16.msra.mxu0 %v2606
        %2906 = vmatprep.subr.bf16.mxu0 %v2609
        %2907 = vmatpush1.bf16.msra.mxu0 %v2608
        %2908 = vmatprep.subr.bf16.mxu0 %v2611
        %2909 = vmatpush1.bf16.msra.mxu0 %v2610
        %2910 = vmatprep.subr.bf16.mxu0 %v2613
        %2911 = vmatpush1.bf16.msra.mxu0 %v2612
        %2912 = vmatprep.subr.bf16.mxu0 %v2615
        %2913 = vmatpush1.bf16.msra.mxu0 %v2614
        %2914 = vmatprep.subr.bf16.mxu0 %v2617
        %2915 = vmatpush1.bf16.msra.mxu0 %v2616
        %2916 = vmatprep.subr.bf16.mxu0 %v2619
        %2917 = vmatpush1.bf16.msra.mxu0 %v2618
        %2918 = vmatprep.subr.bf16.mxu0 %v2621
        %2919 = vmatpush1.bf16.msra.mxu0 %v2620
        %2920 = vmatprep.mubr.bf16.mxu0 %v842
        %2921 = vmatmul.mubr.bf16.gmra.mrb[0].mxu0 %v841
        %v2922 = vpop.f32.mrb[0].mxu0
        %v2923 = vadd.f32 %v2870, %v2922
        %v2924 = vpop.f32.mrb[0].mxu0
        %v2925 = vadd.f32 %v2872, %v2924
        %v2926 = vpop.f32.mrb[0].mxu0
        %v2927 = vadd.f32 %v2874, %v2926
        %v2928 = vpop.f32.mrb[0].mxu0
        %v2929 = vadd.f32 %v2876, %v2928
        %2930 = vmatprep.mubr.bf16.mxu0 %v850
        %2931 = vmatmul.mubr.bf16.gmra.mrb[0].mxu0 %v849
        %v2932 = vpop.f32.mrb[0].mxu0
        %v2933 = vadd.f32 %v2880, %v2932
        %v2934 = vpop.f32.mrb[0].mxu0
        %v2935 = vadd.f32 %v2882, %v2934
        %v2936 = vpop.f32.mrb[0].mxu0
        %v2937 = vadd.f32 %v2884, %v2936
        %v2938 = vpop.f32.mrb[0].mxu0
        %v2939 = vadd.f32 %v2886, %v2938
        %2940 = vdwg.mxu0
        %2941 = vmatprep.subr.bf16.mxu0 %v2623
        %2942 = vmatpush1.bf16.msra.mxu0 %v2622
        %2943 = vmatprep.subr.bf16.mxu0 %v2625
        %2944 = vmatpush1.bf16.msra.mxu0 %v2624
        %2945 = vmatprep.subr.bf16.mxu0 %v2627
        %2946 = vmatpush1.bf16.msra.mxu0 %v2626
        %2947 = vmatprep.subr.bf16.mxu0 %v2629
        %2948 = vmatpush1.bf16.msra.mxu0 %v2628
        %2949 = vmatprep.subr.bf16.mxu0 %v2631
        %2950 = vmatpush1.bf16.msra.mxu0 %v2630
        %2951 = vmatprep.subr.bf16.mxu0 %v2633
        %2952 = vmatpush1.bf16.msra.mxu0 %v2632
        %2953 = vmatprep.subr.bf16.mxu0 %v2635
        %2954 = vmatpush1.bf16.msra.mxu0 %v2634
        %2955 = vmatprep.subr.bf16.mxu0 %v2637
        %2956 = vmatpush1.bf16.msra.mxu0 %v2636
        %2957 = vmatprep.subr.bf16.mxu0 %v2639
        %2958 = vmatpush1.bf16.msra.mxu0 %v2638
        %2959 = vmatprep.subr.bf16.mxu0 %v2641
        %2960 = vmatpush1.bf16.msra.mxu0 %v2640
        %2961 = vmatprep.subr.bf16.mxu0 %v2643
        %2962 = vmatpush1.bf16.msra.mxu0 %v2642
        %2963 = vmatprep.subr.bf16.mxu0 %v2645
        %2964 = vmatpush1.bf16.msra.mxu0 %v2644
        %2965 = vmatprep.subr.bf16.mxu0 %v2647
        %2966 = vmatpush1.bf16.msra.mxu0 %v2646
        %2967 = vmatprep.subr.bf16.mxu0 %v2649
        %2968 = vmatpush1.bf16.msra.mxu0 %v2648
        %2969 = vmatprep.subr.bf16.mxu0 %v2651
        %2970 = vmatpush1.bf16.msra.mxu0 %v2650
        %2971 = vmatprep.subr.bf16.mxu0 %v2653
        %2972 = vmatpush1.bf16.msra.mxu0 %v2652
        %2973 = vmatprep.mubr.bf16.mxu0 %v844
        %2974 = vmatmul.mubr.bf16.gmra.mrb[0].mxu0 %v843
        %v2975 = vpop.f32.mrb[0].mxu0
        %v2976 = vadd.f32 %v2923, %v2975
        %v2977 = vpop.f32.mrb[0].mxu0
        %v2978 = vadd.f32 %v2925, %v2977
        %v2979 = vpop.f32.mrb[0].mxu0
        %v2980 = vadd.f32 %v2927, %v2979
        %v2981 = vpop.f32.mrb[0].mxu0
        %v2982 = vadd.f32 %v2929, %v2981
        %2983 = vmatprep.mubr.bf16.mxu0 %v852
        %2984 = vmatmul.mubr.bf16.gmra.mrb[0].mxu0 %v851
        %v2985 = vpop.f32.mrb[0].mxu0
        %v2986 = vadd.f32 %v2933, %v2985
        %v2987 = vpop.f32.mrb[0].mxu0
        %v2988 = vadd.f32 %v2935, %v2987
        %v2989 = vpop.f32.mrb[0].mxu0
        %v2990 = vadd.f32 %v2937, %v2989
        %v2991 = vpop.f32.mrb[0].mxu0
        %v2992 = vadd.f32 %v2939, %v2991
        %2993 = vdwg.mxu0
        %v2994 = vmax.f32 %v2976, 0.0
        %v2995 = vmax.f32 %v2978, 0.0
        %v2996 = vmax.f32 %v2980, 0.0
        %v2997 = vmax.f32 %v2982, 0.0
        %v2998 = vmax.f32 %v2986, 0.0
        %v2999 = vmax.f32 %v2988, 0.0
        %v3000 = vmax.f32 %v2990, 0.0
        %v3001 = vmax.f32 %v2992, 0.0
        %v3002 = vld [vmem:[#allocation3] sm:$0xff]
        %v3003 = vld [vmem:[#allocation3 + $0x8] sm:$0xff]
        %v3004 = vld [vmem:[#allocation3 + $0x10] sm:$0xff]
        %v3005 = vld [vmem:[#allocation3 + $0x18] sm:$0xff]
        %v3006 = vld [vmem:[%s547] sm:$0x3]
        %v3008 = vlaneseq
        %v3009 = vshrl.u32 %v3008, 7
        %v3010 = vsub.s32 0, %v3009
        %v3011 = vrot.slane %v3006, %v3010
        %v3012 = vlaneseq
        %v3013 = vshrl.u32 %v3012, 7
        %v3014 = vsub.s32 1, %v3013
        %v3015 = vrot.slane %v3006, %v3014
        %v3018 = vmul.f32 %v2994, %v3011
        %v3019 = vmul.f32 %v2995, %v3015
        %v3020 = vmul.f32 %v2996, %v3011
        %v3021 = vmul.f32 %v2997, %v3015
        %v3022 = vmul.f32 %v2998, %v3011
        %v3023 = vmul.f32 %v2999, %v3015
        %v3024 = vmul.f32 %v3000, %v3011
        %v3025 = vmul.f32 %v3001, %v3015
        %v3026 = vadd.f32 %v3018, %v3019
        %3027 = vadd.xlane.f32.xlu0 %v3026
        %v3028 = vpop.xlane.xlu0 %3027
        %v3029 = vadd.f32 %v3020, %v3021
        %3030 = vadd.xlane.f32.xlu0 %v3029
        %v3031 = vpop.xlane.xlu0 %3030
        %v3032 = vadd.f32 %v3022, %v3023
        %3033 = vadd.xlane.f32.xlu0 %v3032
        %v3034 = vpop.xlane.xlu0 %3033
        %v3035 = vadd.f32 %v3024, %v3025
        %3036 = vadd.xlane.f32.xlu0 %v3035
        %v3037 = vpop.xlane.xlu0 %3036
        %v3038 = vadd.f32 %v3002, %v3028
        %v3039 = vadd.f32 %v3003, %v3031
        %v3040 = vadd.f32 %v3004, %v3034
        %v3041 = vadd.f32 %v3005, %v3037
        %vm3042 = vcmask 7168
        %3043 = vst.msk [vmem:[#allocation3] sm:$0xff] %vm3042, %v3038
        %3044 = vst.msk [vmem:[#allocation3 + $0x8] sm:$0xff] %vm3042, %v3039
        %3045 = vst.msk [vmem:[#allocation3 + $0x10] sm:$0xff] %vm3042, %v3040
        %3046 = vst.msk [vmem:[#allocation3 + $0x18] sm:$0xff] %vm3042, %v3041
        %p3047 = scmp.eq.s32.totalorder %s28, 3
        // Predicated region
        $region101: #{tpu_custom_call.1} parent=59 // pred_check
          %p3048 = pneg %p3047
        $region102: #{tpu_custom_call.1} parent=59 // pred_check_branch
          %3050 = sbr.rel (%p3048) target = $region104
        $region103: #{tpu_custom_call.1} parent=59 // pred_region
          %v3051 = vld [vmem:[#allocation3] sm:$0xff]
          %v3052 = vld [vmem:[#allocation3 + $0x8] sm:$0xff]
          %v3053 = vld [vmem:[#allocation3 + $0x10] sm:$0xff]
          %v3054 = vld [vmem:[#allocation3 + $0x18] sm:$0xff]
          %v3055 = vld [vmem:[#allocation4] sm:$0x1]
          %v3057 = vlaneseq
          %v3058 = vshrl.u32 %v3057, 7
          %v3059 = vsub.s32 0, %v3058
          %v3060 = vrot.slane %v3055, %v3059
          %v3062 = vadd.f32 %v3051, %v3060
          %v3063 = vadd.f32 %v3052, %v3060
          %v3064 = vadd.f32 %v3053, %v3060
          %v3065 = vadd.f32 %v3054, %v3060
          %v3066 = vxor.u32 %v3062, 2147483648
          %v3067 = vxor.u32 %v3063, 2147483648
          %v3068 = vxor.u32 %v3064, 2147483648
          %v3069 = vxor.u32 %v3065, 2147483648
          %v3070 = vmul.f32 %v3066, 1.442695
          %v3071 = vpow.pop %v3070
          %v3072 = vmul.f32 %v3067, 1.442695
          %v3073 = vpow.pop %v3072
          %v3074 = vmul.f32 %v3068, 1.442695
          %v3075 = vpow.pop %v3074
          %v3076 = vmul.f32 %v3069, 1.442695
          %v3077 = vpow.pop %v3076
          %v3078 = vadd.f32 %v3071, 1.0
          %v3079 = vadd.f32 %v3073, 1.0
          %v3080 = vadd.f32 %v3075, 1.0
          %v3081 = vadd.f32 %v3077, 1.0
          %v3082 = vrcp.pop %v3078
          %v3083 = vmul.f32 1.0, %v3082
          %v3084 = vrcp.pop %v3079
          %v3085 = vmul.f32 1.0, %v3084
          %v3086 = vrcp.pop %v3080
          %v3087 = vmul.f32 1.0, %v3086
          %v3088 = vrcp.pop %v3081
          %v3089 = vmul.f32 1.0, %v3088
          %3090 = vst.msk [vmem:[%s11] sm:$0xff] %vm3042, %v3083
          %3091 = vst.msk [vmem:[%s11 + $0x8] sm:$0xff] %vm3042, %v3085
          %3092 = vst.msk [vmem:[%s11 + $0x10] sm:$0xff] %vm3042, %v3087
          %3093 = vst.msk [vmem:[%s11 + $0x18] sm:$0xff] %vm3042, %v3089
          %v3094 = vld [vmem:[#allocation2] sm:$0xff]
          %v3095 = vld [vmem:[#allocation2 + $0x8] sm:$0xff]
          %v3096 = vld [vmem:[#allocation2 + $0x10] sm:$0xff]
          %v3097 = vld [vmem:[#allocation2 + $0x18] sm:$0xff]
          %v3098 = vld [vmem:[#allocation2 + $0x20] sm:$0xff]
          %v3099 = vld [vmem:[#allocation2 + $0x28] sm:$0xff]
          %v3100 = vld [vmem:[#allocation2 + $0x30] sm:$0xff]
          %v3101 = vld [vmem:[#allocation2 + $0x38] sm:$0xff]
          %v3102 = vld [vmem:[#allocation16] sm:$0x3]
          %v3104 = vlaneseq
          %v3105 = vshrl.u32 %v3104, 7
          %v3106 = vsub.s32 0, %v3105
          %v3107 = vrot.slane %v3102, %v3106
          %v3108 = vlaneseq
          %v3109 = vshrl.u32 %v3108, 7
          %v3110 = vsub.s32 1, %v3109
          %v3111 = vrot.slane %v3102, %v3110
          %v3114 = vadd.f32 %v3094, %v3107
          %v3115 = vadd.f32 %v3095, %v3111
          %v3116 = vadd.f32 %v3096, %v3107
          %v3117 = vadd.f32 %v3097, %v3111
          %v3118 = vadd.f32 %v3098, %v3107
          %v3119 = vadd.f32 %v3099, %v3111
          %v3120 = vadd.f32 %v3100, %v3107
          %v3121 = vadd.f32 %v3101, %v3111
          %3123 = vset.pattern.permute.xlu0 0
          %3124 = vperm.xlu0 %3123, %v3083
          %v3125 = vpop.permute.xlu0 %3124
          %3128 = vset.pattern.permute.xlu0 0
          %3129 = vperm.xlu0 %3128, %v3085
          %v3130 = vpop.permute.xlu0 %3129
          %3133 = vset.pattern.permute.xlu0 0
          %3134 = vperm.xlu0 %3133, %v3087
          %v3135 = vpop.permute.xlu0 %3134
          %3138 = vset.pattern.permute.xlu0 0
          %3139 = vperm.xlu0 %3138, %v3089
          %v3140 = vpop.permute.xlu0 %3139
          %v3142 = vmul.f32 %v3114, %v3125
          %v3143 = vmul.f32 %v3115, %v3125
          %v3144 = vmul.f32 %v3116, %v3130
          %v3145 = vmul.f32 %v3117, %v3130
          %v3146 = vmul.f32 %v3118, %v3135
          %v3147 = vmul.f32 %v3119, %v3135
          %v3148 = vmul.f32 %v3120, %v3140
          %v3149 = vmul.f32 %v3121, %v3140
          %v3150 = vld [vmem:[#allocation8] sm:$0x3]
          %vm3151 = vcmask 261120
          %v3153 = vsel %vm3151, %v3150, 0
          %3155 = vmatprep.subr.mxu0 %v3143
          %3156 = vmatpush1.msra.mxu0 %v3142
          %3157 = vmatprep.subr.mxu0 %v3145
          %3158 = vmatpush1.msra.mxu0 %v3144
          %3159 = vmatprep.subr.mxu0 %v3147
          %3160 = vmatpush1.msra.mxu0 %v3146
          %3161 = vmatprep.subr.mxu0 %v3149
          %3162 = vmatpush1.msra.mxu0 %v3148
          %3163 = vmatprep.subr.mxu0 0.0
          %3164 = vmatpush1.msra.mxu0 0.0
          %3165 = vmatprep.subr.mxu0 0.0
          %3166 = vmatpush1.msra.mxu0 0.0
          %3167 = vmatprep.subr.mxu0 0.0
          %3168 = vmatpush1.msra.mxu0 0.0
          %3169 = vmatprep.subr.mxu0 0.0
          %3170 = vmatpush1.msra.mxu0 0.0
          %3171 = vmatprep.subr.mxu0 0.0
          %3172 = vmatpush1.msra.mxu0 0.0
          %3173 = vmatprep.subr.mxu0 0.0
          %3174 = vmatpush1.msra.mxu0 0.0
          %3175 = vmatprep.subr.mxu0 0.0
          %3176 = vmatpush1.msra.mxu0 0.0
          %3177 = vmatprep.subr.mxu0 0.0
          %3178 = vmatpush1.msra.mxu0 0.0
          %3179 = vmatprep.subr.mxu0 0.0
          %3180 = vmatpush1.msra.mxu0 0.0
          %3181 = vmatprep.subr.mxu0 0.0
          %3182 = vmatpush1.msra.mxu0 0.0
          %3183 = vmatprep.subr.mxu0 0.0
          %3184 = vmatpush1.msra.mxu0 0.0
          %3185 = vmatprep.subr.mxu0 0.0
          %3186 = vmatpush1.msra.mxu0 0.0
          %3187 = vmatprep.subr.mxu0 0.0
          %3188 = vmatpush1.msra.mxu0 0.0
          %3189 = vmatprep.subr.mxu0 0.0
          %3190 = vmatpush1.msra.mxu0 0.0
          %3191 = vmatprep.subr.mxu0 0.0
          %3192 = vmatpush1.msra.mxu0 0.0
          %3193 = vmatprep.subr.mxu0 0.0
          %3194 = vmatpush1.msra.mxu0 0.0
          %3195 = vmatprep.subr.mxu0 0.0
          %3196 = vmatpush1.msra.mxu0 0.0
          %3197 = vmatprep.subr.mxu0 0.0
          %3198 = vmatpush1.msra.mxu0 0.0
          %3199 = vmatprep.subr.mxu0 0.0
          %3200 = vmatpush1.msra.mxu0 0.0
          %3201 = vmatprep.subr.mxu0 0.0
          %3202 = vmatpush1.msra.mxu0 0.0
          %3203 = vmatprep.subr.mxu0 0.0
          %3204 = vmatpush1.msra.mxu0 0.0
          %3205 = vmatprep.subr.mxu0 0.0
          %3206 = vmatpush1.msra.mxu0 0.0
          %3207 = vmatprep.subr.mxu0 0.0
          %3208 = vmatpush1.msra.mxu0 0.0
          %3209 = vmatprep.subr.mxu0 0.0
          %3210 = vmatpush1.msra.mxu0 0.0
          %3211 = vmatprep.subr.mxu0 0.0
          %3212 = vmatpush1.msra.mxu0 0.0
          %3213 = vmatprep.subr.mxu0 0.0
          %3214 = vmatpush1.msra.mxu0 0.0
          %3215 = vmatprep.subr.mxu0 0.0
          %3216 = vmatpush1.msra.mxu0 0.0
          %3217 = vmatprep.subr.mxu0 0.0
          %3218 = vmatpush1.msra.mxu0 0.0
          %3219 = vmatprep.mubr.f32.mxu0 0.0
          %3220 = vmatmul.mubr.f32.gmra.mrb[0].mxu0 %v3153
          %v3221 = vpop.f32.mrb[0].mxu0
          %v3222 = vadd.f32 0.0, %v3221
          %v3223 = vpop.f32.mrb[0].mxu0
          %v3224 = vadd.f32 0.0, %v3223
          %3225 = vdwg.mxu0
          %v3226 = vmul.f32 %v3222, %v3222
          %v3227 = vmul.f32 %v3224, %v3224
          %vm3228 = vcmask 1041408
          %v3229 = vsel %vm3228, %v3226, 0.0
          %v3230 = vsel %vm3228, %v3227, 0.0
          %v3231 = vadd.f32 %v3229, %v3230
          %3232 = vadd.xlane.f32.xlu0 %v3231
          %v3233 = vpop.xlane.xlu0 %3232
          %v3234 = vadd.f32 %v3233, 1e-10
          %v3235 = vrsqrt.pop %v3234
          %v3236 = vmul.f32 %v3222, %v3235
          %v3237 = vmul.f32 %v3224, %v3235
          %v3240 = vcombine.low %v3236, %v3237
          %v3242 = vunpack.c.l.s4 1983009808
          %v3243 = vunpack.c.0.s8 %v3242
          %v3244 = vlaneseq
          %v3245 = vshrl.u32 %v3244, 7
          %v3246 = vsub.s32 %v3243, %v3245
          %v3247 = vrot.slane %v3240, %v3246
          %3249 = vst [vmem:[#allocation17] sm:$0xf] %v3247
        $region104: #{tpu_custom_call.1} parent=59 // pred_fallthru
          _
        // Predicated region
        $region105: #{tpu_custom_call.1} parent=59 // pred_check
          %p3250 = pneg %p281
        $region106: #{tpu_custom_call.1} parent=59 // pred_check_branch
          %3252 = sbr.rel (%p3250) target = $region108
        $region107: #{tpu_custom_call.1} parent=59 // pred_region
          %s3254 = ssub.s32 64, 64
          %3255 = vsyncadd [#allocation7], %s3254
          %s3257 = sshll.u32 [#allocation17], 4
          %s3258 = int_to_ptr.vmem [resolvable:$true] %s3257
          %3260 = dma.vmem_to_hbm [thread:$0]  %s3258, 64, %s10, [#allocation7]
        $region108: #{tpu_custom_call.1} parent=59 // pred_fallthru
          _
        // Predicated region
        $region109: #{tpu_custom_call.1} parent=59 // pred_check
          %p3261 = pneg %p302
        $region110: #{tpu_custom_call.1} parent=59 // pred_check_branch
          %3263 = sbr.rel (%p3261) target = $region112
        $region111: #{tpu_custom_call.1} parent=59 // pred_region
          _
        $region112: #{tpu_custom_call.1} parent=59 // pred_fallthru
          _
        // Predicated region
        $region113: #{tpu_custom_call.1} parent=59 // pred_check
          %p3264 = pneg %p281
        $region114: #{tpu_custom_call.1} parent=59 // pred_check_branch
          %3266 = sbr.rel (%p3264) target = $region116
        $region115: #{tpu_custom_call.1} parent=59 // pred_region
          %3267 = dma.done [#allocation7], 64
        $region116: #{tpu_custom_call.1} parent=59 // pred_fallthru
          _
        // Predicated region
        $region117: #{tpu_custom_call.1} parent=59 // pred_check
          %p3268 = pneg %p302
        $region118: #{tpu_custom_call.1} parent=59 // pred_check_branch
          %3270 = sbr.rel (%p3268) target = $region120
        $region119: #{tpu_custom_call.1} parent=59 // pred_region
          _
        $region120: #{tpu_custom_call.1} parent=59 // pred_fallthru
          _
      $region60: #{tpu_custom_call.1} parent=5 // pred_fallthru
        _
      %p3271 = scmp.le.s32.totalorder 2, %s23
      // Predicated region
      $region121: #{tpu_custom_call.1} parent=5 // pred_check
        %p3272 = pneg %p3271
      $region122: #{tpu_custom_call.1} parent=5 // pred_check_branch
        %3274 = sbr.rel (%p3272) target = $region124
      $region123: #{tpu_custom_call.1} parent=5 // pred_region
        %s3275 = ssub.s32 %s23, 2
      $region124: #{tpu_custom_call.1} parent=5 // pred_fallthru
        _
    $region6: #{tpu_custom_call.1} parent=1 // loop_footer
      %s27 = sadd.s32 1, %s23
    $region7: #{tpu_custom_call.1} parent=1 // loop_footer_branch
      %22 = sbr.rel target = $region3
    $region8: #{tpu_custom_call.1} parent=1 // loop_exit
      _
    %3276 = vsyncpa [#allocation6], 1
    %s3277 = scalar_lea.sflag [#allocation6], 1
    %3278 = vsyncpa %s3277, 1
    %3279 = vsyncpa [#allocation9], 1
    %3280 = vsyncpa [#allocation7], 1
    %s3281 = scalar_lea.sflag [#allocation7], 1
    %3282 = vsyncpa %s3281, 1

</llo_original>
